<compile_context>
chip_gen: v7x
topology: tpu7x:2x2x1
jax: 0.10.0
libtpu: 0.0.40
codegen_flags: <defaults>
</compile_context>

<pallas_src>
import functools

import jax
import jax.numpy as jnp
from jax.experimental import pallas as pl
from jax.experimental.pallas import tpu as pltpu

LN_EPS = 1e-5  # nn.LayerNorm default


def _decoder_kernel(num_hidden_layers, compute_dtype,
                    x_ref, w1_ref, b1_ref, wh_ref, bh_ref, w2_ref, b2_ref,
                    o_ref):
    cast = ((lambda a: a) if compute_dtype == jnp.float32
            else (lambda a: a.astype(compute_dtype)))

    # ---- LayerNorm (affine already folded into W1/b1 by the wrapper) -------
    # All ops below are row-local: required for the ragged-last-block scheme.
    x = x_ref[...].astype(jnp.float32)                        # (tm, E)
    mean = jnp.mean(x, axis=-1, keepdims=True)
    xc = x - mean
    var = jnp.mean(xc * xc, axis=-1, keepdims=True)
    h = xc * jax.lax.rsqrt(var + LN_EPS)

    # ---- layer1 + ReLU ------------------------------------------------------
    h = jnp.dot(cast(h), w1_ref[...], preferred_element_type=jnp.float32) \
        + b1_ref[...]
    h = jnp.maximum(h, 0.0)

    # ---- hidden Linear + ReLU stack (num_layers - 2 layers) -----------------
    if num_hidden_layers <= 8:
        for l in range(num_hidden_layers):
            h = jnp.dot(cast(h), wh_ref[l], preferred_element_type=jnp.float32) \
                + bh_ref[l:l + 1, :]
            h = jnp.maximum(h, 0.0)
    else:
        def body(l, hh):
            hh = jnp.dot(cast(hh), wh_ref[l],
                         preferred_element_type=jnp.float32) \
                 + bh_ref[pl.ds(l, 1), :]
            return jnp.maximum(hh, 0.0)
        h = jax.lax.fori_loop(0, num_hidden_layers, body, h)

    # ---- layer2 (no activation) ---------------------------------------------
    out = jnp.dot(cast(h), w2_ref[...], preferred_element_type=jnp.float32) \
        + b2_ref[...]
    o_ref[...] = out.astype(o_ref.dtype)


def _round_up(a, b):
    return (a + b - 1) // b * b


def _invariant_spec(shape):
    """BlockSpec for a grid-invariant (weight) input; single-buffered."""
    zeros = (0,) * len(shape)
    if hasattr(pl, "Buffered"):
        try:
            return pl.BlockSpec(shape, lambda i: zeros,
                                pipeline_mode=pl.Buffered(1))
        except TypeError:
            pass
    return pl.BlockSpec(shape, lambda i: zeros)


def decoder_deep_norm_pallas(x, params, *, tile_rows=512, min_grid_steps=4,
                             use_bf16=False):
    """x: (..., E) -> (..., output_dim), matching the PyTorch forward."""
    gamma, beta, w1, b1, wh, bh, w2, b2 = params
    E = x.shape[-1]
    H = w1.shape[1]
    O = w2.shape[1]
    L = wh.shape[0]

    f32 = jnp.float32
    compute_dtype = jnp.bfloat16 if use_bf16 else jnp.float32

    # One-time fold of the LayerNorm affine into the first Linear:
    #   (xn*gamma + beta) @ W1 + b1 = xn @ (diag(gamma)@W1) + (b1 + beta@W1)
    # Folded bias stays f32 (costs H floats of VMEM, avoids re-quantization).
    w1f = gamma.astype(f32)[:, None] * w1.astype(f32)
    b1f = b1.astype(f32) + beta.astype(f32) @ w1.astype(f32)

    if use_bf16:
        w1f = w1f.astype(jnp.bfloat16)
        wh_k = wh.astype(jnp.bfloat16)
        w2_k = w2.astype(jnp.bfloat16)
    else:
        wh_k = wh
        w2_k = w2
    bh_k = bh

    # Handle num_layers == 2 (empty hidden stack) with a dummy, unused layer.
    if L == 0:
        wh_k = jnp.zeros((1, H, H), wh_k.dtype)
        bh_k = jnp.zeros((1, H), f32)
    Lw = wh_k.shape[0]

    b1_2 = b1f.reshape(1, H)
    b2_2 = b2.astype(f32).reshape(1, O)

    lead_shape = x.shape[:-1]
    x2 = x.reshape(-1, E)
    N = x2.shape[0]

    # Row-tile choice: aim for >= min_grid_steps grid steps (>= 2 per v7x TC,
    # enough depth to pipeline the x DMA on v5e/v6e), multiple of 8, capped at
    # tile_rows.  No padding: ragged last block, OOB rows masked on writeback.
    target_steps = max(int(min_grid_steps), 1)
    tm = _round_up(max(pl.cdiv(N, target_steps), 1), 8)
    tm = max(8, min(tm, _round_up(tile_rows, 8)))
    grid = (pl.cdiv(N, tm),)

    x_itemsize = jnp.dtype(x.dtype).itemsize
    weight_bytes = (w1f.size * w1f.dtype.itemsize
                    + wh_k.size * wh_k.dtype.itemsize
                    + w2_k.size * w2_k.dtype.itemsize
                    + b1_2.size * 4
                    + bh_k.size * bh_k.dtype.itemsize
                    + b2_2.size * 4)
    # VMEM budget: double-buffered x/out tiles + SINGLE-buffered resident
    # weights + a few activation-sized temporaries.  Only raise the scoped
    # VMEM limit when the conservative 16 MiB default (v5e) would be exceeded,
    # and cap it generation-aware (~80% of physical per-core VMEM).
    vmem_need = (2 * tm * E * 4 + 2 * tm * O * 4
                 + weight_bytes
                 + 4 * tm * max(E, H) * 4
                 + (1 << 20))
    if vmem_need > (16 << 20):
        try:
            vmem_cap = int(pltpu.get_tpu_info().vmem_capacity_bytes)
        except Exception:
            vmem_cap = 64 << 20  # conservative fallback (v7x per-TC size)
        vmem_limit = int(min(vmem_need * 5 // 4, (vmem_cap * 4) // 5))
    else:
        vmem_limit = None

    cost = pl.CostEstimate(
        flops=2 * N * (E * H + L * H * H + H * O) + 10 * N * E,
        transcendentals=N,
        bytes_accessed=N * (E + O) * x_itemsize + weight_bytes,
    )

    out = pl.pallas_call(
        functools.partial(_decoder_kernel, L, compute_dtype),
        out_shape=jax.ShapeDtypeStruct((N, O), x.dtype),
        grid_spec=pltpu.PrefetchScalarGridSpec(
            num_scalar_prefetch=0,
            grid=grid,
            in_specs=[
                pl.BlockSpec((tm, E), lambda i: (i, 0)),  # x row tile (streamed)
                _invariant_spec((E, H)),                  # W1 (gamma folded)
                _invariant_spec((1, H)),                  # b1 (beta folded, f32)
                _invariant_spec((Lw, H, H)),              # hidden Ws
                _invariant_spec((Lw, H)),                 # hidden bs
                _invariant_spec((H, O)),                  # W2
                _invariant_spec((1, O)),                  # b2
            ],
            out_specs=pl.BlockSpec((tm, O), lambda i: (i, 0)),
        ),
        compiler_params=pltpu.CompilerParams(
            dimension_semantics=("parallel",),
            vmem_limit_bytes=vmem_limit),
        cost_estimate=cost,
    )(x2, w1f, b1_2, wh_k, bh_k, w2_k, b2_2)

    return out.reshape(*lead_shape, O)


def init_params(key, embedding_dim, num_layers, hidden_dim, output_dim=2,
                dtype=jnp.float32):
    """Deterministic synthetic parameters (shapes match the PyTorch module)."""
    assert num_layers >= 3, "this script builds num_layers - 2 >= 1 hidden layers"
    L = num_layers - 2
    ks = jax.random.split(key, 8)
    # Non-trivial LN affine so the gamma/beta folding path is actually tested.
    gamma = 1.0 + 0.1 * jax.random.normal(ks[6], (embedding_dim,), dtype)
    beta = 0.05 * jax.random.normal(ks[7], (embedding_dim,), dtype)
    # NOTE: weights stored already transposed vs torch (in_features, out_features)
    w1 = (jax.random.normal(ks[0], (embedding_dim, hidden_dim), dtype)
          / jnp.sqrt(embedding_dim).astype(dtype))
    b1 = jax.random.normal(ks[1], (hidden_dim,), dtype) * 0.01
    wh = (jax.random.normal(ks[2], (L, hidden_dim, hidden_dim), dtype)
          / jnp.sqrt(hidden_dim).astype(dtype))
    bh = jax.random.normal(ks[3], (L, hidden_dim), dtype) * 0.01
    w2 = (jax.random.normal(ks[4], (hidden_dim, output_dim), dtype)
          / jnp.sqrt(hidden_dim).astype(dtype))
    b2 = jax.random.normal(ks[5], (output_dim,), dtype) * 0.01
    return gamma, beta, w1, b1, wh, bh, w2, b2


def decoder_deep_norm_ref(x, params):
    """Pure-JAX reference mirroring the PyTorch forward."""
    gamma, beta, w1, b1, wh, bh, w2, b2 = params
    mean = jnp.mean(x, axis=-1, keepdims=True)
    var = jnp.mean((x - mean) ** 2, axis=-1, keepdims=True)
    h = (x - mean) / jnp.sqrt(var + LN_EPS) * gamma + beta
    h = jax.nn.relu(h @ w1 + b1)
    for l in range(wh.shape[0]):
        h = jax.nn.relu(h @ wh[l] + bh[l])
    return h @ w2 + b2


if __name__ == "__main__":
    key = jax.random.PRNGKey(0)
    k_x, k_p = jax.random.split(key)

    # N = batch*seq = 1024 rows -> grid of 4 steps at tm=256:
    # 2 pipelined steps per TensorCore on v7x, 4 on v5e/v6e.
    batch, seq = 4, 256
    embedding_dim, num_layers, hidden_dim, output_dim = 32, 4, 32, 2

    x = jax.random.normal(k_x, (batch, seq, embedding_dim), jnp.float32)
    params = init_params(k_p, embedding_dim, num_layers, hidden_dim, output_dim)

    # jit the wrapper so the gamma/beta fold and bias reshapes constant-fold
    # once instead of running on the per-call host path.
    fwd = jax.jit(decoder_deep_norm_pallas,
                  static_argnames=("tile_rows", "min_grid_steps", "use_bf16"))

    out = jax.block_until_ready(fwd(x, params))
    ref = decoder_deep_norm_ref(x, params)
    assert out.shape == (batch, seq, output_dim)
    assert jnp.allclose(out, ref, atol=2e-4, rtol=2e-4), \
        float(jnp.max(jnp.abs(out - ref)))

    # Ragged row count (N not a multiple of 8 / tm): exercises the partial
    # last block path (no jnp.pad copy of x).
    x_ragged = jax.random.normal(k_x, (2, 7, embedding_dim), jnp.float32)
    out_r = jax.block_until_ready(fwd(x_ragged, params))
    ref_r = decoder_deep_norm_ref(x_ragged, params)
    assert out_r.shape == (2, 7, output_dim)
    assert jnp.allclose(out_r, ref_r, atol=2e-4, rtol=2e-4), \
        float(jnp.max(jnp.abs(out_r - ref_r)))

    print("KERNEL_OK")
</pallas_src>

<mosaic_0001>
module attributes {stable_mosaic.version = 11 : i64} {
  func.func @_decoder_kernel(%arg0: i32, %arg1: memref<256x32xf32, #tpu.memory_space<vmem>>, %arg2: memref<32x32xf32, #tpu.memory_space<vmem>>, %arg3: memref<1x32xf32, #tpu.memory_space<vmem>>, %arg4: memref<2x32x32xf32, #tpu.memory_space<vmem>>, %arg5: memref<2x32xf32, #tpu.memory_space<vmem>>, %arg6: memref<32x2xf32, #tpu.memory_space<vmem>>, %arg7: memref<1x2xf32, #tpu.memory_space<vmem>>, %arg8: memref<256x2xf32, #tpu.memory_space<vmem>>) attributes {dimension_semantics = [#tpu.dimension_semantics<parallel>], iteration_bounds = array<i64: 4>, scalar_prefetch = 0 : i64, scratch_operands = 0 : i64, tpu.core_type = #tpu.core_type<tc>, window_params = [{transform_indices = @transform_0, window_bounds = array<i64: 256, 32>}, {pipeline_mode = #tpu.pipeline_mode<synchronous>, transform_indices = @transform_1, window_bounds = array<i64: 32, 32>}, {pipeline_mode = #tpu.pipeline_mode<synchronous>, transform_indices = @transform_2, window_bounds = array<i64: 1, 32>}, {pipeline_mode = #tpu.pipeline_mode<synchronous>, transform_indices = @transform_3, window_bounds = array<i64: 2, 32, 32>}, {pipeline_mode = #tpu.pipeline_mode<synchronous>, transform_indices = @transform_4, window_bounds = array<i64: 2, 32>}, {pipeline_mode = #tpu.pipeline_mode<synchronous>, transform_indices = @transform_5, window_bounds = array<i64: 32, 2>}, {pipeline_mode = #tpu.pipeline_mode<synchronous>, transform_indices = @transform_6, window_bounds = array<i64: 1, 2>}, {transform_indices = @transform_7, window_bounds = array<i64: 256, 2>}]} {
    %c0 = arith.constant 0 : index
    %c0_0 = arith.constant 0 : index
    %0 = vector.load %arg1[%c0, %c0_0] : memref<256x32xf32, #tpu.memory_space<vmem>>, vector<256x32xf32>
    %cst = arith.constant dense<0.000000e+00> : vector<256xf32>
    %1 = vector.multi_reduction <add>, %0, %cst [1] : vector<256x32xf32> to vector<256xf32>
    %2 = vector.shape_cast %1 : vector<256xf32> to vector<256x1xf32>
    %cst_1 = arith.constant 3.200000e+01 : f32
    %3 = vector.broadcast %cst_1 : f32 to vector<256x1xf32>
    %4 = arith.divf %2, %3 : vector<256x1xf32>
    %5 = vector.broadcast %4 : vector<256x1xf32> to vector<256x32xf32>
    %6 = arith.subf %0, %5 : vector<256x32xf32>
    %7 = arith.mulf %6, %6 : vector<256x32xf32>
    %cst_2 = arith.constant dense<0.000000e+00> : vector<256xf32>
    %8 = vector.multi_reduction <add>, %7, %cst_2 [1] : vector<256x32xf32> to vector<256xf32>
    %9 = vector.shape_cast %8 : vector<256xf32> to vector<256x1xf32>
    %cst_3 = arith.constant 3.200000e+01 : f32
    %10 = vector.broadcast %cst_3 : f32 to vector<256x1xf32>
    %11 = arith.divf %9, %10 : vector<256x1xf32>
    %cst_4 = arith.constant 9.99999974E-6 : f32
    %12 = vector.broadcast %cst_4 : f32 to vector<256x1xf32>
    %13 = arith.addf %11, %12 : vector<256x1xf32>
    %14 = math.rsqrt %13 : vector<256x1xf32>
    %15 = vector.broadcast %14 : vector<256x1xf32> to vector<256x32xf32>
    %16 = arith.mulf %6, %15 : vector<256x32xf32>
    %c0_5 = arith.constant 0 : index
    %c0_6 = arith.constant 0 : index
    %17 = vector.load %arg2[%c0_5, %c0_6] : memref<32x32xf32, #tpu.memory_space<vmem>>, vector<32x32xf32>
    %cst_7 = arith.constant dense<0.000000e+00> : vector<256x32xf32>
    %18 = tpu.matmul %16, %17, %cst_7 {dimension_numbers = #tpu.dot_dimension_numbers<[1], [0], [0], [1], [0, 0, 1, 1], [], []>} : vector<256x32xf32>, vector<32x32xf32>, vector<256x32xf32> -> vector<256x32xf32>
    %c0_8 = arith.constant 0 : index
    %c0_9 = arith.constant 0 : index
    %19 = vector.load %arg3[%c0_8, %c0_9] : memref<1x32xf32, #tpu.memory_space<vmem>>, vector<1x32xf32>
    %20 = vector.broadcast %19 : vector<1x32xf32> to vector<256x32xf32>
    %21 = arith.addf %18, %20 : vector<256x32xf32>
    %cst_10 = arith.constant 0.000000e+00 : f32
    %22 = vector.broadcast %cst_10 : f32 to vector<256x32xf32>
    %23 = arith.maximumf %21, %22 : vector<256x32xf32>
    %c0_11 = arith.constant 0 : index
    %c0_12 = arith.constant 0 : index
    %c0_13 = arith.constant 0 : index
    %24 = vector.load %arg4[%c0_11, %c0_12, %c0_13] : memref<2x32x32xf32, #tpu.memory_space<vmem>>, vector<1x32x32xf32>
    %25 = vector.shape_cast %24 : vector<1x32x32xf32> to vector<32x32xf32>
    %cst_14 = arith.constant dense<0.000000e+00> : vector<256x32xf32>
    %26 = tpu.matmul %23, %25, %cst_14 {dimension_numbers = #tpu.dot_dimension_numbers<[1], [0], [0], [1], [0, 0, 1, 1], [], []>} : vector<256x32xf32>, vector<32x32xf32>, vector<256x32xf32> -> vector<256x32xf32>
    %c0_15 = arith.constant 0 : index
    %c0_16 = arith.constant 0 : index
    %27 = vector.load %arg5[%c0_15, %c0_16] : memref<2x32xf32, #tpu.memory_space<vmem>>, vector<1x32xf32>
    %28 = vector.broadcast %27 : vector<1x32xf32> to vector<256x32xf32>
    %29 = arith.addf %26, %28 : vector<256x32xf32>
    %cst_17 = arith.constant 0.000000e+00 : f32
    %30 = vector.broadcast %cst_17 : f32 to vector<256x32xf32>
    %31 = arith.maximumf %29, %30 : vector<256x32xf32>
    %c1 = arith.constant 1 : index
    %c0_18 = arith.constant 0 : index
    %c0_19 = arith.constant 0 : index
    %32 = vector.load %arg4[%c1, %c0_18, %c0_19] : memref<2x32x32xf32, #tpu.memory_space<vmem>>, vector<1x32x32xf32>
    %33 = vector.shape_cast %32 : vector<1x32x32xf32> to vector<32x32xf32>
    %cst_20 = arith.constant dense<0.000000e+00> : vector<256x32xf32>
    %34 = tpu.matmul %31, %33, %cst_20 {dimension_numbers = #tpu.dot_dimension_numbers<[1], [0], [0], [1], [0, 0, 1, 1], [], []>} : vector<256x32xf32>, vector<32x32xf32>, vector<256x32xf32> -> vector<256x32xf32>
    %c1_21 = arith.constant 1 : index
    %c0_22 = arith.constant 0 : index
    %35 = vector.load %arg5[%c1_21, %c0_22] : memref<2x32xf32, #tpu.memory_space<vmem>>, vector<1x32xf32>
    %36 = vector.broadcast %35 : vector<1x32xf32> to vector<256x32xf32>
    %37 = arith.addf %34, %36 : vector<256x32xf32>
    %cst_23 = arith.constant 0.000000e+00 : f32
    %38 = vector.broadcast %cst_23 : f32 to vector<256x32xf32>
    %39 = arith.maximumf %37, %38 : vector<256x32xf32>
    %c0_24 = arith.constant 0 : index
    %c0_25 = arith.constant 0 : index
    %40 = vector.load %arg6[%c0_24, %c0_25] : memref<32x2xf32, #tpu.memory_space<vmem>>, vector<32x2xf32>
    %cst_26 = arith.constant dense<0.000000e+00> : vector<256x2xf32>
    %41 = tpu.matmul %39, %40, %cst_26 {dimension_numbers = #tpu.dot_dimension_numbers<[1], [0], [0], [1], [0, 0, 1, 1], [], []>} : vector<256x32xf32>, vector<32x2xf32>, vector<256x2xf32> -> vector<256x2xf32>
    %c0_27 = arith.constant 0 : index
    %c0_28 = arith.constant 0 : index
    %42 = vector.load %arg7[%c0_27, %c0_28] : memref<1x2xf32, #tpu.memory_space<vmem>>, vector<1x2xf32>
    %43 = vector.broadcast %42 : vector<1x2xf32> to vector<256x2xf32>
    %44 = arith.addf %41, %43 : vector<256x2xf32>
    %c0_29 = arith.constant 0 : index
    %c0_30 = arith.constant 0 : index
    %45 = vector.load %arg8[%c0_29, %c0_30] : memref<256x2xf32, #tpu.memory_space<vmem>>, vector<256x2xf32>
    tpu.vector_store %arg8[%c0_29, %c0_30], %44 {strides = array<i32>} : memref<256x2xf32, #tpu.memory_space<vmem>>, vector<256x2xf32>,
    return
  }
  func.func @transform_0(%arg0: i32) -> (i32, i32) {
    %c0_i32 = arith.constant 0 : i32
    %c0_i32_0 = arith.constant 0 : i32
    return %arg0, %c0_i32 : i32, i32
  }
  func.func @transform_1(%arg0: i32) -> (i32, i32) {
    %c0_i32 = arith.constant 0 : i32
    %c0_i32_0 = arith.constant 0 : i32
    %c0_i32_1 = arith.constant 0 : i32
    return %c0_i32, %c0_i32_0 : i32, i32
  }
  func.func @transform_2(%arg0: i32) -> (i32, i32) {
    %c0_i32 = arith.constant 0 : i32
    %c0_i32_0 = arith.constant 0 : i32
    %c0_i32_1 = arith.constant 0 : i32
    return %c0_i32, %c0_i32_0 : i32, i32
  }
  func.func @transform_3(%arg0: i32) -> (i32, i32, i32) {
    %c0_i32 = arith.constant 0 : i32
    %c0_i32_0 = arith.constant 0 : i32
    %c0_i32_1 = arith.constant 0 : i32
    %c0_i32_2 = arith.constant 0 : i32
    return %c0_i32, %c0_i32_0, %c0_i32_1 : i32, i32, i32
  }
  func.func @transform_4(%arg0: i32) -> (i32, i32) {
    %c0_i32 = arith.constant 0 : i32
    %c0_i32_0 = arith.constant 0 : i32
    %c0_i32_1 = arith.constant 0 : i32
    return %c0_i32, %c0_i32_0 : i32, i32
  }
  func.func @transform_5(%arg0: i32) -> (i32, i32) {
    %c0_i32 = arith.constant 0 : i32
    %c0_i32_0 = arith.constant 0 : i32
    %c0_i32_1 = arith.constant 0 : i32
    return %c0_i32, %c0_i32_0 : i32, i32
  }
  func.func @transform_6(%arg0: i32) -> (i32, i32) {
    %c0_i32 = arith.constant 0 : i32
    %c0_i32_0 = arith.constant 0 : i32
    %c0_i32_1 = arith.constant 0 : i32
    return %c0_i32, %c0_i32_0 : i32, i32
  }
  func.func @transform_7(%arg0: i32) -> (i32, i32) {
    %c0_i32 = arith.constant 0 : i32
    %c0_i32_0 = arith.constant 0 : i32
    return %arg0, %c0_i32 : i32, i32
  }
}

</mosaic_0001>

<llo_original>
// kernel: decoder_deep_norm_pallas.1
$region0: #{decoder_deep_norm_pallas.1}
  #allocation0 [shape = 'u32[]', space=smem, size = 0x4, offset = 0x4, fixed_abs, tag = 'smem constant byte address 0x4 - core index']
  #allocation1 [shape = 'u32[144,128]{1,0:T(1,128)}', space=vmem, size = 0x12000, scoped, tag = 'internal scratch']
  %s0 = inlined_call_operand.vmem [shape: f32[1024,32], index: 0, kind: input, shape index: {}]
  %s1 = inlined_call_operand.vmem [shape: f32[32,32], index: 1, kind: input, shape index: {}]
  %s2 = inlined_call_operand.vmem [shape: f32[1,32], index: 2, kind: input, shape index: {}]
  %s3 = inlined_call_operand.vmem [shape: f32[2,32,32], index: 3, kind: input, shape index: {}]
  %s4 = inlined_call_operand.vmem [shape: f32[2,32], index: 4, kind: input, shape index: {}]
  %s5 = inlined_call_operand.vmem [shape: f32[32,2], index: 5, kind: input, shape index: {}]
  %s6 = inlined_call_operand.vmem [shape: f32[1,2], index: 6, kind: input, shape index: {}]
  %s7 = inlined_call_operand.vmem [shape: f32[1024,2], index: 7, kind: output, shape index: {}]
  %s8 = sld [smem:[#allocation0]]
  $region61: #{decoder_deep_norm_pallas.1} parent=0
    _
  %s10 = ssub.s32 1, %s8
  %s11 = scalar_select 0, %s10, %s8
  loop: start=0, step=1, limit=6
  $region2: #{decoder_deep_norm_pallas.1} parent=0 // loop_pre_header
    _
  $region3: #{decoder_deep_norm_pallas.1} parent=0 // loop_header
    %s13 = sphi 0, %s17
    %p14 = scmp.ge.s32.totalorder %s13, 6
    %s23 = sphi 0, %s25
    %s26 = sphi 0, %s23
    %s27 = sphi 0, %s26
    %s43 = sphi 0, %s27
    %s47 = sphi 0, %s47
    %s49 = sphi 0, %s47
    %s50 = sphi 0, %s49
    %s64 = sphi 0, %s50
    %s68 = sphi 0, %s68
    %s70 = sphi 0, %s68
    %s71 = sphi 0, %s70
    %s85 = sphi 0, %s71
    %s89 = sphi 0, %s89
    %s91 = sphi 0, %s89
    %s92 = sphi 0, %s91
    %s106 = sphi 0, %s92
    %s110 = sphi 0, %s110
    %s112 = sphi 0, %s110
    %s113 = sphi 0, %s112
    %s127 = sphi 0, %s113
    %s131 = sphi 0, %s131
    %s133 = sphi 0, %s131
    %s134 = sphi 0, %s133
    %s148 = sphi 0, %s134
    %s152 = sphi 0, %s152
    %s154 = sphi 0, %s152
    %s155 = sphi 0, %s154
    %s169 = sphi 0, %s155
    %s175 = sphi 0, %s177
    %s178 = sphi 0, %s175
    %s179 = sphi 0, %s178
    %s195 = sphi 0, %s179
  $region4: #{decoder_deep_norm_pallas.1} parent=0 // loop_header_branch
    %16 = sbr.rel (%p14) target = $region8
  $region5: #{decoder_deep_norm_pallas.1} parent=0 // loop_body
    %s18 = ssub.s32 %s13, 1
    %s19 = ssub.s32 %s13, 2
    %s20 = sadd.s32 %s13, 1
    %s21 = ssub.s32 %s13, %s20
    %p22 = scmp.eq.s32.totalorder %s21, 0
    %s24 = sadd.s32 %s23, 1
    %s25 = scalar_select %p22, %s23, %s24
    %p28 = pneg %p22
    %p29 = scmp.eq.s32.totalorder %s13, 3
    %p30 = por %p28, %p29
    %p31 = scmp.ne.s32.totalorder %s23, %s26
    %p32 = scmp.eq.s32.totalorder %s13, 0
    %p33 = por %p31, %p32
    %p34 = scmp.ne.s32.totalorder %s23, %s26
    %p35 = scmp.eq.s32.totalorder %s18, 3
    %p36 = por %p34, %p35
    %p37 = scmp.ne.s32.totalorder %s26, %s27
    %p38 = scmp.eq.s32.totalorder %s18, 0
    %p39 = por %p37, %p38
    %p40 = scmp.ne.s32.totalorder %s26, %s27
    %p41 = scmp.eq.s32.totalorder %s19, 3
    %p42 = por %p40, %p41
    %p44 = scmp.ne.s32.totalorder %s27, %s43
    %p45 = scmp.eq.s32.totalorder %s19, 0
    %p46 = por %p44, %p45
    %s48 = sadd.s32 %s47, 1
    %p51 = scmp.eq.s32.totalorder %s13, 3
    %p52 = scmp.ne.s32.totalorder %s47, %s49
    %p53 = scmp.eq.s32.totalorder %s13, 0
    %p54 = por %p52, %p53
    %p55 = scmp.ne.s32.totalorder %s47, %s49
    %p56 = scmp.eq.s32.totalorder %s18, 3
    %p57 = por %p55, %p56
    %p58 = scmp.ne.s32.totalorder %s49, %s50
    %p59 = scmp.eq.s32.totalorder %s18, 0
    %p60 = por %p58, %p59
    %p61 = scmp.ne.s32.totalorder %s49, %s50
    %p62 = scmp.eq.s32.totalorder %s19, 3
    %p63 = por %p61, %p62
    %p65 = scmp.ne.s32.totalorder %s50, %s64
    %p66 = scmp.eq.s32.totalorder %s19, 0
    %p67 = por %p65, %p66
    %s69 = sadd.s32 %s68, 1
    %p72 = scmp.eq.s32.totalorder %s13, 3
    %p73 = scmp.ne.s32.totalorder %s68, %s70
    %p74 = scmp.eq.s32.totalorder %s13, 0
    %p75 = por %p73, %p74
    %p76 = scmp.ne.s32.totalorder %s68, %s70
    %p77 = scmp.eq.s32.totalorder %s18, 3
    %p78 = por %p76, %p77
    %p79 = scmp.ne.s32.totalorder %s70, %s71
    %p80 = scmp.eq.s32.totalorder %s18, 0
    %p81 = por %p79, %p80
    %p82 = scmp.ne.s32.totalorder %s70, %s71
    %p83 = scmp.eq.s32.totalorder %s19, 3
    %p84 = por %p82, %p83
    %p86 = scmp.ne.s32.totalorder %s71, %s85
    %p87 = scmp.eq.s32.totalorder %s19, 0
    %p88 = por %p86, %p87
    %s90 = sadd.s32 %s89, 1
    %p93 = scmp.eq.s32.totalorder %s13, 3
    %p94 = scmp.ne.s32.totalorder %s89, %s91
    %p95 = scmp.eq.s32.totalorder %s13, 0
    %p96 = por %p94, %p95
    %p97 = scmp.ne.s32.totalorder %s89, %s91
    %p98 = scmp.eq.s32.totalorder %s18, 3
    %p99 = por %p97, %p98
    %p100 = scmp.ne.s32.totalorder %s91, %s92
    %p101 = scmp.eq.s32.totalorder %s18, 0
    %p102 = por %p100, %p101
    %p103 = scmp.ne.s32.totalorder %s91, %s92
    %p104 = scmp.eq.s32.totalorder %s19, 3
    %p105 = por %p103, %p104
    %p107 = scmp.ne.s32.totalorder %s92, %s106
    %p108 = scmp.eq.s32.totalorder %s19, 0
    %p109 = por %p107, %p108
    %s111 = sadd.s32 %s110, 1
    %p114 = scmp.eq.s32.totalorder %s13, 3
    %p115 = scmp.ne.s32.totalorder %s110, %s112
    %p116 = scmp.eq.s32.totalorder %s13, 0
    %p117 = por %p115, %p116
    %p118 = scmp.ne.s32.totalorder %s110, %s112
    %p119 = scmp.eq.s32.totalorder %s18, 3
    %p120 = por %p118, %p119
    %p121 = scmp.ne.s32.totalorder %s112, %s113
    %p122 = scmp.eq.s32.totalorder %s18, 0
    %p123 = por %p121, %p122
    %p124 = scmp.ne.s32.totalorder %s112, %s113
    %p125 = scmp.eq.s32.totalorder %s19, 3
    %p126 = por %p124, %p125
    %p128 = scmp.ne.s32.totalorder %s113, %s127
    %p129 = scmp.eq.s32.totalorder %s19, 0
    %p130 = por %p128, %p129
    %s132 = sadd.s32 %s131, 1
    %p135 = scmp.eq.s32.totalorder %s13, 3
    %p136 = scmp.ne.s32.totalorder %s131, %s133
    %p137 = scmp.eq.s32.totalorder %s13, 0
    %p138 = por %p136, %p137
    %p139 = scmp.ne.s32.totalorder %s131, %s133
    %p140 = scmp.eq.s32.totalorder %s18, 3
    %p141 = por %p139, %p140
    %p142 = scmp.ne.s32.totalorder %s133, %s134
    %p143 = scmp.eq.s32.totalorder %s18, 0
    %p144 = por %p142, %p143
    %p145 = scmp.ne.s32.totalorder %s133, %s134
    %p146 = scmp.eq.s32.totalorder %s19, 3
    %p147 = por %p145, %p146
    %p149 = scmp.ne.s32.totalorder %s134, %s148
    %p150 = scmp.eq.s32.totalorder %s19, 0
    %p151 = por %p149, %p150
    %s153 = sadd.s32 %s152, 1
    %p156 = scmp.eq.s32.totalorder %s13, 3
    %p157 = scmp.ne.s32.totalorder %s152, %s154
    %p158 = scmp.eq.s32.totalorder %s13, 0
    %p159 = por %p157, %p158
    %p160 = scmp.ne.s32.totalorder %s152, %s154
    %p161 = scmp.eq.s32.totalorder %s18, 3
    %p162 = por %p160, %p161
    %p163 = scmp.ne.s32.totalorder %s154, %s155
    %p164 = scmp.eq.s32.totalorder %s18, 0
    %p165 = por %p163, %p164
    %p166 = scmp.ne.s32.totalorder %s154, %s155
    %p167 = scmp.eq.s32.totalorder %s19, 3
    %p168 = por %p166, %p167
    %p170 = scmp.ne.s32.totalorder %s155, %s169
    %p171 = scmp.eq.s32.totalorder %s19, 0
    %p172 = por %p170, %p171
    %s173 = ssub.s32 %s13, %s20
    %p174 = scmp.eq.s32.totalorder %s173, 0
    %s176 = sadd.s32 %s175, 1
    %s177 = scalar_select %p174, %s175, %s176
    %p180 = pneg %p174
    %p181 = scmp.eq.s32.totalorder %s13, 3
    %p182 = por %p180, %p181
    %p183 = scmp.ne.s32.totalorder %s175, %s178
    %p184 = scmp.eq.s32.totalorder %s13, 0
    %p185 = por %p183, %p184
    %p186 = scmp.ne.s32.totalorder %s175, %s178
    %p187 = scmp.eq.s32.totalorder %s18, 3
    %p188 = por %p186, %p187
    %p189 = scmp.ne.s32.totalorder %s178, %s179
    %p190 = scmp.eq.s32.totalorder %s18, 0
    %p191 = por %p189, %p190
    %p192 = scmp.ne.s32.totalorder %s178, %s179
    %p193 = scmp.eq.s32.totalorder %s19, 3
    %p194 = por %p192, %p193
    %p196 = scmp.ne.s32.totalorder %s179, %s195
    %p197 = scmp.eq.s32.totalorder %s19, 0
    %p198 = por %p196, %p197
    %p199 = scmp.le.s32.totalorder 1, %s13
    %p200 = scmp.lt.s32.totalorder %s13, 5
    %p201 = pnand %p199, %p200
    %p202 = pneg %p201
    // Predicated region
    $region9: #{decoder_deep_norm_pallas.1} parent=5 // pred_check
      _
    $region10: #{decoder_deep_norm_pallas.1} parent=5 // pred_check_branch
      %204 = sbr.rel (%p201) target = $region12
    $region11: #{decoder_deep_norm_pallas.1} parent=5 // pred_region
      %s205 = ssub.s32 %s13, 1
      // Predicated region
      $region13: #{decoder_deep_norm_pallas.1} parent=11 // pred_check
        %p206 = pneg %p60
      $region14: #{decoder_deep_norm_pallas.1} parent=11 // pred_check_branch
        %208 = sbr.rel (%p206) target = $region16
      $region15: #{decoder_deep_norm_pallas.1} parent=11 // pred_region
        _
      $region16: #{decoder_deep_norm_pallas.1} parent=11 // pred_fallthru
        _
      // Predicated region
      $region17: #{decoder_deep_norm_pallas.1} parent=11 // pred_check
        %p209 = pneg %p81
      $region18: #{decoder_deep_norm_pallas.1} parent=11 // pred_check_branch
        %211 = sbr.rel (%p209) target = $region20
      $region19: #{decoder_deep_norm_pallas.1} parent=11 // pred_region
        _
      $region20: #{decoder_deep_norm_pallas.1} parent=11 // pred_fallthru
        _
      // Predicated region
      $region21: #{decoder_deep_norm_pallas.1} parent=11 // pred_check
        %p212 = pneg %p102
      $region22: #{decoder_deep_norm_pallas.1} parent=11 // pred_check_branch
        %214 = sbr.rel (%p212) target = $region24
      $region23: #{decoder_deep_norm_pallas.1} parent=11 // pred_region
        _
      $region24: #{decoder_deep_norm_pallas.1} parent=11 // pred_fallthru
        _
      // Predicated region
      $region25: #{decoder_deep_norm_pallas.1} parent=11 // pred_check
        %p215 = pneg %p123
      $region26: #{decoder_deep_norm_pallas.1} parent=11 // pred_check_branch
        %217 = sbr.rel (%p215) target = $region28
      $region27: #{decoder_deep_norm_pallas.1} parent=11 // pred_region
        _
      $region28: #{decoder_deep_norm_pallas.1} parent=11 // pred_fallthru
        _
      // Predicated region
      $region29: #{decoder_deep_norm_pallas.1} parent=11 // pred_check
        %p218 = pneg %p144
      $region30: #{decoder_deep_norm_pallas.1} parent=11 // pred_check_branch
        %220 = sbr.rel (%p218) target = $region32
      $region31: #{decoder_deep_norm_pallas.1} parent=11 // pred_region
        _
      $region32: #{decoder_deep_norm_pallas.1} parent=11 // pred_fallthru
        _
      // Predicated region
      $region33: #{decoder_deep_norm_pallas.1} parent=11 // pred_check
        %p221 = pneg %p165
      $region34: #{decoder_deep_norm_pallas.1} parent=11 // pred_check_branch
        %223 = sbr.rel (%p221) target = $region36
      $region35: #{decoder_deep_norm_pallas.1} parent=11 // pred_region
        _
      $region36: #{decoder_deep_norm_pallas.1} parent=11 // pred_fallthru
        _
    $region12: #{decoder_deep_norm_pallas.1} parent=5 // pred_fallthru
      _
    %p224 = scmp.lt.s32.totalorder %s13, 4
    // Predicated region
    $region37: #{decoder_deep_norm_pallas.1} parent=5 // pred_check
      %p225 = pneg %p224
    $region38: #{decoder_deep_norm_pallas.1} parent=5 // pred_check_branch
      %227 = sbr.rel (%p225) target = $region40
    $region39: #{decoder_deep_norm_pallas.1} parent=5 // pred_region
      // Predicated region
      $region41: #{decoder_deep_norm_pallas.1} parent=39 // pred_check
        %p228 = pneg %p33
      $region42: #{decoder_deep_norm_pallas.1} parent=39 // pred_check_branch
        %230 = sbr.rel (%p228) target = $region44
      $region43: #{decoder_deep_norm_pallas.1} parent=39 // pred_region
        %s231 = smul.u32 32, %s13
        %p232 = scmp.lt.s32.totalorder %s231, 127
        %s233 = scalar_select %p232, %s231, 127
        %s234 = smul.addr %s233, 8
        %s235 = scalar_lea.vmem %s0, %s234
        %s236 = smul.u32 32, %s13
      $region44: #{decoder_deep_norm_pallas.1} parent=39 // pred_fallthru
        _
    $region40: #{decoder_deep_norm_pallas.1} parent=5 // pred_fallthru
      _
    %p237 = scmp.le.s32.totalorder 1, %s13
    %p238 = scmp.lt.s32.totalorder %s13, 5
    %p239 = pnand %p237, %p238
    %p240 = pneg %p239
    // Predicated region
    $region45: #{decoder_deep_norm_pallas.1} parent=5 // pred_check
      _
    $region46: #{decoder_deep_norm_pallas.1} parent=5 // pred_check_branch
      %242 = sbr.rel (%p239) target = $region48
    $region47: #{decoder_deep_norm_pallas.1} parent=5 // pred_region
      %s243 = ssub.s32 %s13, 1
      %s244 = smul.u32 32, %s18
      %p245 = scmp.lt.s32.totalorder %s244, 127
      %s246 = scalar_select %p245, %s244, 127
      %s247 = smul.addr %s246, 8
      %s248 = scalar_lea.vmem %s0, %s247
      %p249 = pneg %p39
      %p250 = pneg %p36
      %p251 = pneg %p60
      %p252 = pneg %p57
      %p253 = pneg %p81
      %p254 = pneg %p78
      %p255 = pneg %p102
      %p256 = pneg %p99
      %p257 = pneg %p123
      %p258 = pneg %p120
      %p259 = pneg %p144
      %p260 = pneg %p141
      %p261 = pneg %p165
      %p262 = pneg %p162
      %p263 = pneg %p191
      %p264 = pneg %p188
      %s265 = smul.u32 32, %s18
      %p266 = scmp.lt.s32.totalorder %s265, 127
      %s267 = scalar_select %p266, %s265, 127
      %s268 = smul.addr %s267, 8
      %s269 = scalar_lea.vmem %s7, %s268
      %s270 = smul.u32 32, %s18
      %p271 = scmp.lt.s32.totalorder %s270, 127
      %s272 = scalar_select %p271, %s270, 127
      %s273 = smul.addr %s272, 8
      %s274 = scalar_lea.vmem %s0, %s273
      %s275 = smul.u32 32, %s18
      %s276 = smul.u32 32, %s18
      %p277 = scmp.lt.s32.totalorder %s276, 127
      %s278 = scalar_select %p277, %s276, 127
      %s279 = smul.addr %s278, 8
      %s280 = scalar_lea.vmem %s7, %s279
      %s281 = smul.u32 32, %s18
      %v282 = vld [vmem:[%s274] sm:$0xff]
      %v283 = vld [vmem:[%s274 + $0x8] sm:$0xff]
      %v284 = vld [vmem:[%s274 + $0x10] sm:$0xff]
      %v285 = vld [vmem:[%s274 + $0x18] sm:$0xff]
      %v286 = vld [vmem:[%s274 + $0x20] sm:$0xff]
      %v287 = vld [vmem:[%s274 + $0x28] sm:$0xff]
      %v288 = vld [vmem:[%s274 + $0x30] sm:$0xff]
      %v289 = vld [vmem:[%s274 + $0x38] sm:$0xff]
      %v290 = vld [vmem:[%s274 + $0x40] sm:$0xff]
      %v291 = vld [vmem:[%s274 + $0x48] sm:$0xff]
      %v292 = vld [vmem:[%s274 + $0x50] sm:$0xff]
      %v293 = vld [vmem:[%s274 + $0x58] sm:$0xff]
      %v294 = vld [vmem:[%s274 + $0x60] sm:$0xff]
      %v295 = vld [vmem:[%s274 + $0x68] sm:$0xff]
      %v296 = vld [vmem:[%s274 + $0x70] sm:$0xff]
      %v297 = vld [vmem:[%s274 + $0x78] sm:$0xff]
      %v298 = vld [vmem:[%s274 + $0x80] sm:$0xff]
      %v299 = vld [vmem:[%s274 + $0x88] sm:$0xff]
      %v300 = vld [vmem:[%s274 + $0x90] sm:$0xff]
      %v301 = vld [vmem:[%s274 + $0x98] sm:$0xff]
      %v302 = vld [vmem:[%s274 + $0xa0] sm:$0xff]
      %v303 = vld [vmem:[%s274 + $0xa8] sm:$0xff]
      %v304 = vld [vmem:[%s274 + $0xb0] sm:$0xff]
      %v305 = vld [vmem:[%s274 + $0xb8] sm:$0xff]
      %v306 = vld [vmem:[%s274 + $0xc0] sm:$0xff]
      %v307 = vld [vmem:[%s274 + $0xc8] sm:$0xff]
      %v308 = vld [vmem:[%s274 + $0xd0] sm:$0xff]
      %v309 = vld [vmem:[%s274 + $0xd8] sm:$0xff]
      %v310 = vld [vmem:[%s274 + $0xe0] sm:$0xff]
      %v311 = vld [vmem:[%s274 + $0xe8] sm:$0xff]
      %v312 = vld [vmem:[%s274 + $0xf0] sm:$0xff]
      %v313 = vld [vmem:[%s274 + $0xf8] sm:$0xff]
      %vm314 = vcmask 261120
      %v315 = vsel %vm314, %v282, 0.0
      %316 = vadd.xlane.f32.xlu0 %v315
      %v317 = vpop.xlane.xlu0 %316
      %v318 = vsel %vm314, %v283, 0.0
      %319 = vadd.xlane.f32.xlu0 %v318
      %v320 = vpop.xlane.xlu0 %319
      %v321 = vsel %vm314, %v284, 0.0
      %322 = vadd.xlane.f32.xlu0 %v321
      %v323 = vpop.xlane.xlu0 %322
      %v324 = vsel %vm314, %v285, 0.0
      %325 = vadd.xlane.f32.xlu0 %v324
      %v326 = vpop.xlane.xlu0 %325
      %v327 = vsel %vm314, %v286, 0.0
      %328 = vadd.xlane.f32.xlu0 %v327
      %v329 = vpop.xlane.xlu0 %328
      %v330 = vsel %vm314, %v287, 0.0
      %331 = vadd.xlane.f32.xlu0 %v330
      %v332 = vpop.xlane.xlu0 %331
      %v333 = vsel %vm314, %v288, 0.0
      %334 = vadd.xlane.f32.xlu0 %v333
      %v335 = vpop.xlane.xlu0 %334
      %v336 = vsel %vm314, %v289, 0.0
      %337 = vadd.xlane.f32.xlu0 %v336
      %v338 = vpop.xlane.xlu0 %337
      %v339 = vsel %vm314, %v290, 0.0
      %340 = vadd.xlane.f32.xlu0 %v339
      %v341 = vpop.xlane.xlu0 %340
      %v342 = vsel %vm314, %v291, 0.0
      %343 = vadd.xlane.f32.xlu0 %v342
      %v344 = vpop.xlane.xlu0 %343
      %v345 = vsel %vm314, %v292, 0.0
      %346 = vadd.xlane.f32.xlu0 %v345
      %v347 = vpop.xlane.xlu0 %346
      %v348 = vsel %vm314, %v293, 0.0
      %349 = vadd.xlane.f32.xlu0 %v348
      %v350 = vpop.xlane.xlu0 %349
      %v351 = vsel %vm314, %v294, 0.0
      %352 = vadd.xlane.f32.xlu0 %v351
      %v353 = vpop.xlane.xlu0 %352
      %v354 = vsel %vm314, %v295, 0.0
      %355 = vadd.xlane.f32.xlu0 %v354
      %v356 = vpop.xlane.xlu0 %355
      %v357 = vsel %vm314, %v296, 0.0
      %358 = vadd.xlane.f32.xlu0 %v357
      %v359 = vpop.xlane.xlu0 %358
      %v360 = vsel %vm314, %v297, 0.0
      %361 = vadd.xlane.f32.xlu0 %v360
      %v362 = vpop.xlane.xlu0 %361
      %v363 = vsel %vm314, %v298, 0.0
      %364 = vadd.xlane.f32.xlu0 %v363
      %v365 = vpop.xlane.xlu0 %364
      %v366 = vsel %vm314, %v299, 0.0
      %367 = vadd.xlane.f32.xlu0 %v366
      %v368 = vpop.xlane.xlu0 %367
      %v369 = vsel %vm314, %v300, 0.0
      %370 = vadd.xlane.f32.xlu0 %v369
      %v371 = vpop.xlane.xlu0 %370
      %v372 = vsel %vm314, %v301, 0.0
      %373 = vadd.xlane.f32.xlu0 %v372
      %v374 = vpop.xlane.xlu0 %373
      %v375 = vsel %vm314, %v302, 0.0
      %376 = vadd.xlane.f32.xlu0 %v375
      %v377 = vpop.xlane.xlu0 %376
      %v378 = vsel %vm314, %v303, 0.0
      %379 = vadd.xlane.f32.xlu0 %v378
      %v380 = vpop.xlane.xlu0 %379
      %v381 = vsel %vm314, %v304, 0.0
      %382 = vadd.xlane.f32.xlu0 %v381
      %v383 = vpop.xlane.xlu0 %382
      %v384 = vsel %vm314, %v305, 0.0
      %385 = vadd.xlane.f32.xlu0 %v384
      %v386 = vpop.xlane.xlu0 %385
      %v387 = vsel %vm314, %v306, 0.0
      %388 = vadd.xlane.f32.xlu0 %v387
      %v389 = vpop.xlane.xlu0 %388
      %v390 = vsel %vm314, %v307, 0.0
      %391 = vadd.xlane.f32.xlu0 %v390
      %v392 = vpop.xlane.xlu0 %391
      %v393 = vsel %vm314, %v308, 0.0
      %394 = vadd.xlane.f32.xlu0 %v393
      %v395 = vpop.xlane.xlu0 %394
      %v396 = vsel %vm314, %v309, 0.0
      %397 = vadd.xlane.f32.xlu0 %v396
      %v398 = vpop.xlane.xlu0 %397
      %v399 = vsel %vm314, %v310, 0.0
      %400 = vadd.xlane.f32.xlu0 %v399
      %v401 = vpop.xlane.xlu0 %400
      %v402 = vsel %vm314, %v311, 0.0
      %403 = vadd.xlane.f32.xlu0 %v402
      %v404 = vpop.xlane.xlu0 %403
      %v405 = vsel %vm314, %v312, 0.0
      %406 = vadd.xlane.f32.xlu0 %v405
      %v407 = vpop.xlane.xlu0 %406
      %v408 = vsel %vm314, %v313, 0.0
      %409 = vadd.xlane.f32.xlu0 %v408
      %v410 = vpop.xlane.xlu0 %409
      %v411 = vrcp.pop 32.0
      %v412 = vmul.f32 %v317, %v411
      %v413 = vmul.f32 %v320, %v411
      %v414 = vmul.f32 %v323, %v411
      %v415 = vmul.f32 %v326, %v411
      %v416 = vmul.f32 %v329, %v411
      %v417 = vmul.f32 %v332, %v411
      %v418 = vmul.f32 %v335, %v411
      %v419 = vmul.f32 %v338, %v411
      %v420 = vmul.f32 %v341, %v411
      %v421 = vmul.f32 %v344, %v411
      %v422 = vmul.f32 %v347, %v411
      %v423 = vmul.f32 %v350, %v411
      %v424 = vmul.f32 %v353, %v411
      %v425 = vmul.f32 %v356, %v411
      %v426 = vmul.f32 %v359, %v411
      %v427 = vmul.f32 %v362, %v411
      %v428 = vmul.f32 %v365, %v411
      %v429 = vmul.f32 %v368, %v411
      %v430 = vmul.f32 %v371, %v411
      %v431 = vmul.f32 %v374, %v411
      %v432 = vmul.f32 %v377, %v411
      %v433 = vmul.f32 %v380, %v411
      %v434 = vmul.f32 %v383, %v411
      %v435 = vmul.f32 %v386, %v411
      %v436 = vmul.f32 %v389, %v411
      %v437 = vmul.f32 %v392, %v411
      %v438 = vmul.f32 %v395, %v411
      %v439 = vmul.f32 %v398, %v411
      %v440 = vmul.f32 %v401, %v411
      %v441 = vmul.f32 %v404, %v411
      %v442 = vmul.f32 %v407, %v411
      %v443 = vmul.f32 %v410, %v411
      %v444 = vsub.f32 %v282, %v412
      %v445 = vsub.f32 %v283, %v413
      %v446 = vsub.f32 %v284, %v414
      %v447 = vsub.f32 %v285, %v415
      %v448 = vsub.f32 %v286, %v416
      %v449 = vsub.f32 %v287, %v417
      %v450 = vsub.f32 %v288, %v418
      %v451 = vsub.f32 %v289, %v419
      %v452 = vsub.f32 %v290, %v420
      %v453 = vsub.f32 %v291, %v421
      %v454 = vsub.f32 %v292, %v422
      %v455 = vsub.f32 %v293, %v423
      %v456 = vsub.f32 %v294, %v424
      %v457 = vsub.f32 %v295, %v425
      %v458 = vsub.f32 %v296, %v426
      %v459 = vsub.f32 %v297, %v427
      %v460 = vsub.f32 %v298, %v428
      %v461 = vsub.f32 %v299, %v429
      %v462 = vsub.f32 %v300, %v430
      %v463 = vsub.f32 %v301, %v431
      %v464 = vsub.f32 %v302, %v432
      %v465 = vsub.f32 %v303, %v433
      %v466 = vsub.f32 %v304, %v434
      %v467 = vsub.f32 %v305, %v435
      %v468 = vsub.f32 %v306, %v436
      %v469 = vsub.f32 %v307, %v437
      %v470 = vsub.f32 %v308, %v438
      %v471 = vsub.f32 %v309, %v439
      %v472 = vsub.f32 %v310, %v440
      %v473 = vsub.f32 %v311, %v441
      %v474 = vsub.f32 %v312, %v442
      %v475 = vsub.f32 %v313, %v443
      %v476 = vmul.f32 %v444, %v444
      %v477 = vmul.f32 %v445, %v445
      %v478 = vmul.f32 %v446, %v446
      %v479 = vmul.f32 %v447, %v447
      %v480 = vmul.f32 %v448, %v448
      %v481 = vmul.f32 %v449, %v449
      %v482 = vmul.f32 %v450, %v450
      %v483 = vmul.f32 %v451, %v451
      %v484 = vmul.f32 %v452, %v452
      %v485 = vmul.f32 %v453, %v453
      %v486 = vmul.f32 %v454, %v454
      %v487 = vmul.f32 %v455, %v455
      %v488 = vmul.f32 %v456, %v456
      %v489 = vmul.f32 %v457, %v457
      %v490 = vmul.f32 %v458, %v458
      %v491 = vmul.f32 %v459, %v459
      %v492 = vmul.f32 %v460, %v460
      %v493 = vmul.f32 %v461, %v461
      %v494 = vmul.f32 %v462, %v462
      %v495 = vmul.f32 %v463, %v463
      %v496 = vmul.f32 %v464, %v464
      %v497 = vmul.f32 %v465, %v465
      %v498 = vmul.f32 %v466, %v466
      %v499 = vmul.f32 %v467, %v467
      %v500 = vmul.f32 %v468, %v468
      %v501 = vmul.f32 %v469, %v469
      %v502 = vmul.f32 %v470, %v470
      %v503 = vmul.f32 %v471, %v471
      %v504 = vmul.f32 %v472, %v472
      %v505 = vmul.f32 %v473, %v473
      %v506 = vmul.f32 %v474, %v474
      %v507 = vmul.f32 %v475, %v475
      %v508 = vsel %vm314, %v476, 0.0
      %509 = vadd.xlane.f32.xlu0 %v508
      %v510 = vpop.xlane.xlu0 %509
      %v511 = vsel %vm314, %v477, 0.0
      %512 = vadd.xlane.f32.xlu0 %v511
      %v513 = vpop.xlane.xlu0 %512
      %v514 = vsel %vm314, %v478, 0.0
      %515 = vadd.xlane.f32.xlu0 %v514
      %v516 = vpop.xlane.xlu0 %515
      %v517 = vsel %vm314, %v479, 0.0
      %518 = vadd.xlane.f32.xlu0 %v517
      %v519 = vpop.xlane.xlu0 %518
      %v520 = vsel %vm314, %v480, 0.0
      %521 = vadd.xlane.f32.xlu0 %v520
      %v522 = vpop.xlane.xlu0 %521
      %v523 = vsel %vm314, %v481, 0.0
      %524 = vadd.xlane.f32.xlu0 %v523
      %v525 = vpop.xlane.xlu0 %524
      %v526 = vsel %vm314, %v482, 0.0
      %527 = vadd.xlane.f32.xlu0 %v526
      %v528 = vpop.xlane.xlu0 %527
      %v529 = vsel %vm314, %v483, 0.0
      %530 = vadd.xlane.f32.xlu0 %v529
      %v531 = vpop.xlane.xlu0 %530
      %v532 = vsel %vm314, %v484, 0.0
      %533 = vadd.xlane.f32.xlu0 %v532
      %v534 = vpop.xlane.xlu0 %533
      %v535 = vsel %vm314, %v485, 0.0
      %536 = vadd.xlane.f32.xlu0 %v535
      %v537 = vpop.xlane.xlu0 %536
      %v538 = vsel %vm314, %v486, 0.0
      %539 = vadd.xlane.f32.xlu0 %v538
      %v540 = vpop.xlane.xlu0 %539
      %v541 = vsel %vm314, %v487, 0.0
      %542 = vadd.xlane.f32.xlu0 %v541
      %v543 = vpop.xlane.xlu0 %542
      %v544 = vsel %vm314, %v488, 0.0
      %545 = vadd.xlane.f32.xlu0 %v544
      %v546 = vpop.xlane.xlu0 %545
      %v547 = vsel %vm314, %v489, 0.0
      %548 = vadd.xlane.f32.xlu0 %v547
      %v549 = vpop.xlane.xlu0 %548
      %v550 = vsel %vm314, %v490, 0.0
      %551 = vadd.xlane.f32.xlu0 %v550
      %v552 = vpop.xlane.xlu0 %551
      %v553 = vsel %vm314, %v491, 0.0
      %554 = vadd.xlane.f32.xlu0 %v553
      %v555 = vpop.xlane.xlu0 %554
      %v556 = vsel %vm314, %v492, 0.0
      %557 = vadd.xlane.f32.xlu0 %v556
      %v558 = vpop.xlane.xlu0 %557
      %v559 = vsel %vm314, %v493, 0.0
      %560 = vadd.xlane.f32.xlu0 %v559
      %v561 = vpop.xlane.xlu0 %560
      %v562 = vsel %vm314, %v494, 0.0
      %563 = vadd.xlane.f32.xlu0 %v562
      %v564 = vpop.xlane.xlu0 %563
      %v565 = vsel %vm314, %v495, 0.0
      %566 = vadd.xlane.f32.xlu0 %v565
      %v567 = vpop.xlane.xlu0 %566
      %v568 = vsel %vm314, %v496, 0.0
      %569 = vadd.xlane.f32.xlu0 %v568
      %v570 = vpop.xlane.xlu0 %569
      %v571 = vsel %vm314, %v497, 0.0
      %572 = vadd.xlane.f32.xlu0 %v571
      %v573 = vpop.xlane.xlu0 %572
      %v574 = vsel %vm314, %v498, 0.0
      %575 = vadd.xlane.f32.xlu0 %v574
      %v576 = vpop.xlane.xlu0 %575
      %v577 = vsel %vm314, %v499, 0.0
      %578 = vadd.xlane.f32.xlu0 %v577
      %v579 = vpop.xlane.xlu0 %578
      %v580 = vsel %vm314, %v500, 0.0
      %581 = vadd.xlane.f32.xlu0 %v580
      %v582 = vpop.xlane.xlu0 %581
      %v583 = vsel %vm314, %v501, 0.0
      %584 = vadd.xlane.f32.xlu0 %v583
      %v585 = vpop.xlane.xlu0 %584
      %v586 = vsel %vm314, %v502, 0.0
      %587 = vadd.xlane.f32.xlu0 %v586
      %v588 = vpop.xlane.xlu0 %587
      %v589 = vsel %vm314, %v503, 0.0
      %590 = vadd.xlane.f32.xlu0 %v589
      %v591 = vpop.xlane.xlu0 %590
      %v592 = vsel %vm314, %v504, 0.0
      %593 = vadd.xlane.f32.xlu0 %v592
      %v594 = vpop.xlane.xlu0 %593
      %v595 = vsel %vm314, %v505, 0.0
      %596 = vadd.xlane.f32.xlu0 %v595
      %v597 = vpop.xlane.xlu0 %596
      %v598 = vsel %vm314, %v506, 0.0
      %599 = vadd.xlane.f32.xlu0 %v598
      %v600 = vpop.xlane.xlu0 %599
      %v601 = vsel %vm314, %v507, 0.0
      %602 = vadd.xlane.f32.xlu0 %v601
      %v603 = vpop.xlane.xlu0 %602
      %v604 = vmul.f32 %v510, %v411
      %v605 = vmul.f32 %v513, %v411
      %v606 = vmul.f32 %v516, %v411
      %v607 = vmul.f32 %v519, %v411
      %v608 = vmul.f32 %v522, %v411
      %v609 = vmul.f32 %v525, %v411
      %v610 = vmul.f32 %v528, %v411
      %v611 = vmul.f32 %v531, %v411
      %v612 = vmul.f32 %v534, %v411
      %v613 = vmul.f32 %v537, %v411
      %v614 = vmul.f32 %v540, %v411
      %v615 = vmul.f32 %v543, %v411
      %v616 = vmul.f32 %v546, %v411
      %v617 = vmul.f32 %v549, %v411
      %v618 = vmul.f32 %v552, %v411
      %v619 = vmul.f32 %v555, %v411
      %v620 = vmul.f32 %v558, %v411
      %v621 = vmul.f32 %v561, %v411
      %v622 = vmul.f32 %v564, %v411
      %v623 = vmul.f32 %v567, %v411
      %v624 = vmul.f32 %v570, %v411
      %v625 = vmul.f32 %v573, %v411
      %v626 = vmul.f32 %v576, %v411
      %v627 = vmul.f32 %v579, %v411
      %v628 = vmul.f32 %v582, %v411
      %v629 = vmul.f32 %v585, %v411
      %v630 = vmul.f32 %v588, %v411
      %v631 = vmul.f32 %v591, %v411
      %v632 = vmul.f32 %v594, %v411
      %v633 = vmul.f32 %v597, %v411
      %v634 = vmul.f32 %v600, %v411
      %v635 = vmul.f32 %v603, %v411
      %v636 = vadd.f32 %v604, 1e-05
      %v637 = vadd.f32 %v605, 1e-05
      %v638 = vadd.f32 %v606, 1e-05
      %v639 = vadd.f32 %v607, 1e-05
      %v640 = vadd.f32 %v608, 1e-05
      %v641 = vadd.f32 %v609, 1e-05
      %v642 = vadd.f32 %v610, 1e-05
      %v643 = vadd.f32 %v611, 1e-05
      %v644 = vadd.f32 %v612, 1e-05
      %v645 = vadd.f32 %v613, 1e-05
      %v646 = vadd.f32 %v614, 1e-05
      %v647 = vadd.f32 %v615, 1e-05
      %v648 = vadd.f32 %v616, 1e-05
      %v649 = vadd.f32 %v617, 1e-05
      %v650 = vadd.f32 %v618, 1e-05
      %v651 = vadd.f32 %v619, 1e-05
      %v652 = vadd.f32 %v620, 1e-05
      %v653 = vadd.f32 %v621, 1e-05
      %v654 = vadd.f32 %v622, 1e-05
      %v655 = vadd.f32 %v623, 1e-05
      %v656 = vadd.f32 %v624, 1e-05
      %v657 = vadd.f32 %v625, 1e-05
      %v658 = vadd.f32 %v626, 1e-05
      %v659 = vadd.f32 %v627, 1e-05
      %v660 = vadd.f32 %v628, 1e-05
      %v661 = vadd.f32 %v629, 1e-05
      %v662 = vadd.f32 %v630, 1e-05
      %v663 = vadd.f32 %v631, 1e-05
      %v664 = vadd.f32 %v632, 1e-05
      %v665 = vadd.f32 %v633, 1e-05
      %v666 = vadd.f32 %v634, 1e-05
      %v667 = vadd.f32 %v635, 1e-05
      %v668 = vrsqrt.pop %v636
      %v669 = vrsqrt.pop %v637
      %v670 = vrsqrt.pop %v638
      %v671 = vrsqrt.pop %v639
      %v672 = vrsqrt.pop %v640
      %v673 = vrsqrt.pop %v641
      %v674 = vrsqrt.pop %v642
      %v675 = vrsqrt.pop %v643
      %v676 = vrsqrt.pop %v644
      %v677 = vrsqrt.pop %v645
      %v678 = vrsqrt.pop %v646
      %v679 = vrsqrt.pop %v647
      %v680 = vrsqrt.pop %v648
      %v681 = vrsqrt.pop %v649
      %v682 = vrsqrt.pop %v650
      %v683 = vrsqrt.pop %v651
      %v684 = vrsqrt.pop %v652
      %v685 = vrsqrt.pop %v653
      %v686 = vrsqrt.pop %v654
      %v687 = vrsqrt.pop %v655
      %v688 = vrsqrt.pop %v656
      %v689 = vrsqrt.pop %v657
      %v690 = vrsqrt.pop %v658
      %v691 = vrsqrt.pop %v659
      %v692 = vrsqrt.pop %v660
      %v693 = vrsqrt.pop %v661
      %v694 = vrsqrt.pop %v662
      %v695 = vrsqrt.pop %v663
      %v696 = vrsqrt.pop %v664
      %v697 = vrsqrt.pop %v665
      %v698 = vrsqrt.pop %v666
      %v699 = vrsqrt.pop %v667
      %v700 = vmul.f32 %v444, %v668
      %v701 = vmul.f32 %v445, %v669
      %v702 = vmul.f32 %v446, %v670
      %v703 = vmul.f32 %v447, %v671
      %v704 = vmul.f32 %v448, %v672
      %v705 = vmul.f32 %v449, %v673
      %v706 = vmul.f32 %v450, %v674
      %v707 = vmul.f32 %v451, %v675
      %v708 = vmul.f32 %v452, %v676
      %v709 = vmul.f32 %v453, %v677
      %v710 = vmul.f32 %v454, %v678
      %v711 = vmul.f32 %v455, %v679
      %v712 = vmul.f32 %v456, %v680
      %v713 = vmul.f32 %v457, %v681
      %v714 = vmul.f32 %v458, %v682
      %v715 = vmul.f32 %v459, %v683
      %v716 = vmul.f32 %v460, %v684
      %v717 = vmul.f32 %v461, %v685
      %v718 = vmul.f32 %v462, %v686
      %v719 = vmul.f32 %v463, %v687
      %v720 = vmul.f32 %v464, %v688
      %v721 = vmul.f32 %v465, %v689
      %v722 = vmul.f32 %v466, %v690
      %v723 = vmul.f32 %v467, %v691
      %v724 = vmul.f32 %v468, %v692
      %v725 = vmul.f32 %v469, %v693
      %v726 = vmul.f32 %v470, %v694
      %v727 = vmul.f32 %v471, %v695
      %v728 = vmul.f32 %v472, %v696
      %v729 = vmul.f32 %v473, %v697
      %v730 = vmul.f32 %v474, %v698
      %v731 = vmul.f32 %v475, %v699
      %v732 = vld [vmem:[%s1] sm:$0xff]
      %v733 = vld [vmem:[%s1 + $0x8] sm:$0xff]
      %v734 = vld [vmem:[%s1 + $0x10] sm:$0xff]
      %v735 = vld [vmem:[%s1 + $0x18] sm:$0xff]
      %v736 = vld [vmem:[%s2] sm:$0x1]
      %v738 = vlaneseq
      %v739 = vshrl.u32 %v738, 7
      %v740 = vsub.s32 0, %v739
      %v741 = vrot.slane %v736, %v740
      %v744 = vsel %vm314, %v700, 0
      %v747 = vsel %vm314, %v701, 0
      %v750 = vsel %vm314, %v702, 0
      %v753 = vsel %vm314, %v703, 0
      %v756 = vsel %vm314, %v704, 0
      %v759 = vsel %vm314, %v705, 0
      %v762 = vsel %vm314, %v706, 0
      %v765 = vsel %vm314, %v707, 0
      %v768 = vsel %vm314, %v708, 0
      %v771 = vsel %vm314, %v709, 0
      %v774 = vsel %vm314, %v710, 0
      %v777 = vsel %vm314, %v711, 0
      %v780 = vsel %vm314, %v712, 0
      %v783 = vsel %vm314, %v713, 0
      %v786 = vsel %vm314, %v714, 0
      %v789 = vsel %vm314, %v715, 0
      %v792 = vsel %vm314, %v716, 0
      %v795 = vsel %vm314, %v717, 0
      %v798 = vsel %vm314, %v718, 0
      %v801 = vsel %vm314, %v719, 0
      %v804 = vsel %vm314, %v720, 0
      %v807 = vsel %vm314, %v721, 0
      %v810 = vsel %vm314, %v722, 0
      %v813 = vsel %vm314, %v723, 0
      %v816 = vsel %vm314, %v724, 0
      %v819 = vsel %vm314, %v725, 0
      %v822 = vsel %vm314, %v726, 0
      %v825 = vsel %vm314, %v727, 0
      %v828 = vsel %vm314, %v728, 0
      %v831 = vsel %vm314, %v729, 0
      %v834 = vsel %vm314, %v730, 0
      %v837 = vsel %vm314, %v731, 0
      %839 = vmatprep.subr.mxu0 0.0
      %840 = vmatpush1.msra.mxu0 %v732
      %841 = vmatprep.subr.mxu0 0.0
      %842 = vmatpush1.msra.mxu0 %v733
      %843 = vmatprep.subr.mxu0 0.0
      %844 = vmatpush1.msra.mxu0 %v734
      %845 = vmatprep.subr.mxu0 0.0
      %846 = vmatpush1.msra.mxu0 %v735
      %847 = vmatprep.subr.mxu0 0.0
      %848 = vmatpush1.msra.mxu0 0.0
      %849 = vmatprep.subr.mxu0 0.0
      %850 = vmatpush1.msra.mxu0 0.0
      %851 = vmatprep.subr.mxu0 0.0
      %852 = vmatpush1.msra.mxu0 0.0
      %853 = vmatprep.subr.mxu0 0.0
      %854 = vmatpush1.msra.mxu0 0.0
      %855 = vmatprep.subr.mxu0 0.0
      %856 = vmatpush1.msra.mxu0 0.0
      %857 = vmatprep.subr.mxu0 0.0
      %858 = vmatpush1.msra.mxu0 0.0
      %859 = vmatprep.subr.mxu0 0.0
      %860 = vmatpush1.msra.mxu0 0.0
      %861 = vmatprep.subr.mxu0 0.0
      %862 = vmatpush1.msra.mxu0 0.0
      %863 = vmatprep.subr.mxu0 0.0
      %864 = vmatpush1.msra.mxu0 0.0
      %865 = vmatprep.subr.mxu0 0.0
      %866 = vmatpush1.msra.mxu0 0.0
      %867 = vmatprep.subr.mxu0 0.0
      %868 = vmatpush1.msra.mxu0 0.0
      %869 = vmatprep.subr.mxu0 0.0
      %870 = vmatpush1.msra.mxu0 0.0
      %871 = vmatprep.subr.mxu0 0.0
      %872 = vmatpush1.msra.mxu0 0.0
      %873 = vmatprep.subr.mxu0 0.0
      %874 = vmatpush1.msra.mxu0 0.0
      %875 = vmatprep.subr.mxu0 0.0
      %876 = vmatpush1.msra.mxu0 0.0
      %877 = vmatprep.subr.mxu0 0.0
      %878 = vmatpush1.msra.mxu0 0.0
      %879 = vmatprep.subr.mxu0 0.0
      %880 = vmatpush1.msra.mxu0 0.0
      %881 = vmatprep.subr.mxu0 0.0
      %882 = vmatpush1.msra.mxu0 0.0
      %883 = vmatprep.subr.mxu0 0.0
      %884 = vmatpush1.msra.mxu0 0.0
      %885 = vmatprep.subr.mxu0 0.0
      %886 = vmatpush1.msra.mxu0 0.0
      %887 = vmatprep.subr.mxu0 0.0
      %888 = vmatpush1.msra.mxu0 0.0
      %889 = vmatprep.subr.mxu0 0.0
      %890 = vmatpush1.msra.mxu0 0.0
      %891 = vmatprep.subr.mxu0 0.0
      %892 = vmatpush1.msra.mxu0 0.0
      %893 = vmatprep.subr.mxu0 0.0
      %894 = vmatpush1.msra.mxu0 0.0
      %895 = vmatprep.subr.mxu0 0.0
      %896 = vmatpush1.msra.mxu0 0.0
      %897 = vmatprep.subr.mxu0 0.0
      %898 = vmatpush1.msra.mxu0 0.0
      %899 = vmatprep.subr.mxu0 0.0
      %900 = vmatpush1.msra.mxu0 0.0
      %901 = vmatprep.subr.mxu0 0.0
      %902 = vmatpush1.msra.mxu0 0.0
      %903 = vmatprep.mubr.f32.mxu0 0.0
      %904 = vmatmul.mubr.f32.gmra.mrb[0].mxu0 %v744
      %v905 = vpop.f32.mrb[0].mxu0
      %v906 = vadd.f32 %v741, %v905
      %v907 = vpop.f32.mrb[0].mxu0
      %908 = vmatprep.mubr.f32.mxu0 0.0
      %909 = vmatmul.mubr.f32.gmra.mrb[0].mxu0 %v747
      %v910 = vpop.f32.mrb[0].mxu0
      %v911 = vadd.f32 %v741, %v910
      %v912 = vpop.f32.mrb[0].mxu0
      %913 = vmatprep.mubr.f32.mxu0 0.0
      %914 = vmatmul.mubr.f32.gmra.mrb[0].mxu0 %v750
      %v915 = vpop.f32.mrb[0].mxu0
      %v916 = vadd.f32 %v741, %v915
      %v917 = vpop.f32.mrb[0].mxu0
      %918 = vmatprep.mubr.f32.mxu0 0.0
      %919 = vmatmul.mubr.f32.gmra.mrb[0].mxu0 %v753
      %v920 = vpop.f32.mrb[0].mxu0
      %v921 = vadd.f32 %v741, %v920
      %v922 = vpop.f32.mrb[0].mxu0
      %923 = vmatprep.mubr.f32.mxu0 0.0
      %924 = vmatmul.mubr.f32.gmra.mrb[0].mxu0 %v756
      %v925 = vpop.f32.mrb[0].mxu0
      %v926 = vadd.f32 %v741, %v925
      %v927 = vpop.f32.mrb[0].mxu0
      %928 = vmatprep.mubr.f32.mxu0 0.0
      %929 = vmatmul.mubr.f32.gmra.mrb[0].mxu0 %v759
      %v930 = vpop.f32.mrb[0].mxu0
      %v931 = vadd.f32 %v741, %v930
      %v932 = vpop.f32.mrb[0].mxu0
      %933 = vmatprep.mubr.f32.mxu0 0.0
      %934 = vmatmul.mubr.f32.gmra.mrb[0].mxu0 %v762
      %v935 = vpop.f32.mrb[0].mxu0
      %v936 = vadd.f32 %v741, %v935
      %v937 = vpop.f32.mrb[0].mxu0
      %938 = vmatprep.mubr.f32.mxu0 0.0
      %939 = vmatmul.mubr.f32.gmra.mrb[0].mxu0 %v765
      %v940 = vpop.f32.mrb[0].mxu0
      %v941 = vadd.f32 %v741, %v940
      %v942 = vpop.f32.mrb[0].mxu0
      %943 = vmatprep.mubr.f32.mxu0 0.0
      %944 = vmatmul.mubr.f32.gmra.mrb[0].mxu0 %v768
      %v945 = vpop.f32.mrb[0].mxu0
      %v946 = vadd.f32 %v741, %v945
      %v947 = vpop.f32.mrb[0].mxu0
      %948 = vmatprep.mubr.f32.mxu0 0.0
      %949 = vmatmul.mubr.f32.gmra.mrb[0].mxu0 %v771
      %v950 = vpop.f32.mrb[0].mxu0
      %v951 = vadd.f32 %v741, %v950
      %v952 = vpop.f32.mrb[0].mxu0
      %953 = vmatprep.mubr.f32.mxu0 0.0
      %954 = vmatmul.mubr.f32.gmra.mrb[0].mxu0 %v774
      %v955 = vpop.f32.mrb[0].mxu0
      %v956 = vadd.f32 %v741, %v955
      %v957 = vpop.f32.mrb[0].mxu0
      %958 = vmatprep.mubr.f32.mxu0 0.0
      %959 = vmatmul.mubr.f32.gmra.mrb[0].mxu0 %v777
      %v960 = vpop.f32.mrb[0].mxu0
      %v961 = vadd.f32 %v741, %v960
      %v962 = vpop.f32.mrb[0].mxu0
      %963 = vmatprep.mubr.f32.mxu0 0.0
      %964 = vmatmul.mubr.f32.gmra.mrb[0].mxu0 %v780
      %v965 = vpop.f32.mrb[0].mxu0
      %v966 = vadd.f32 %v741, %v965
      %v967 = vpop.f32.mrb[0].mxu0
      %968 = vmatprep.mubr.f32.mxu0 0.0
      %969 = vmatmul.mubr.f32.gmra.mrb[0].mxu0 %v783
      %v970 = vpop.f32.mrb[0].mxu0
      %v971 = vadd.f32 %v741, %v970
      %v972 = vpop.f32.mrb[0].mxu0
      %973 = vmatprep.mubr.f32.mxu0 0.0
      %974 = vmatmul.mubr.f32.gmra.mrb[0].mxu0 %v786
      %v975 = vpop.f32.mrb[0].mxu0
      %v976 = vadd.f32 %v741, %v975
      %v977 = vpop.f32.mrb[0].mxu0
      %978 = vmatprep.mubr.f32.mxu0 0.0
      %979 = vmatmul.mubr.f32.gmra.mrb[0].mxu0 %v789
      %v980 = vpop.f32.mrb[0].mxu0
      %v981 = vadd.f32 %v741, %v980
      %v982 = vpop.f32.mrb[0].mxu0
      %983 = vmatprep.mubr.f32.mxu0 0.0
      %984 = vmatmul.mubr.f32.gmra.mrb[0].mxu0 %v792
      %v985 = vpop.f32.mrb[0].mxu0
      %v986 = vadd.f32 %v741, %v985
      %v987 = vpop.f32.mrb[0].mxu0
      %988 = vmatprep.mubr.f32.mxu0 0.0
      %989 = vmatmul.mubr.f32.gmra.mrb[0].mxu0 %v795
      %v990 = vpop.f32.mrb[0].mxu0
      %v991 = vadd.f32 %v741, %v990
      %v992 = vpop.f32.mrb[0].mxu0
      %993 = vmatprep.mubr.f32.mxu0 0.0
      %994 = vmatmul.mubr.f32.gmra.mrb[0].mxu0 %v798
      %v995 = vpop.f32.mrb[0].mxu0
      %v996 = vadd.f32 %v741, %v995
      %v997 = vpop.f32.mrb[0].mxu0
      %998 = vmatprep.mubr.f32.mxu0 0.0
      %999 = vmatmul.mubr.f32.gmra.mrb[0].mxu0 %v801
      %v1000 = vpop.f32.mrb[0].mxu0
      %v1001 = vadd.f32 %v741, %v1000
      %v1002 = vpop.f32.mrb[0].mxu0
      %1003 = vmatprep.mubr.f32.mxu0 0.0
      %1004 = vmatmul.mubr.f32.gmra.mrb[0].mxu0 %v804
      %v1005 = vpop.f32.mrb[0].mxu0
      %v1006 = vadd.f32 %v741, %v1005
      %v1007 = vpop.f32.mrb[0].mxu0
      %1008 = vmatprep.mubr.f32.mxu0 0.0
      %1009 = vmatmul.mubr.f32.gmra.mrb[0].mxu0 %v807
      %v1010 = vpop.f32.mrb[0].mxu0
      %v1011 = vadd.f32 %v741, %v1010
      %v1012 = vpop.f32.mrb[0].mxu0
      %1013 = vmatprep.mubr.f32.mxu0 0.0
      %1014 = vmatmul.mubr.f32.gmra.mrb[0].mxu0 %v810
      %v1015 = vpop.f32.mrb[0].mxu0
      %v1016 = vadd.f32 %v741, %v1015
      %v1017 = vpop.f32.mrb[0].mxu0
      %1018 = vmatprep.mubr.f32.mxu0 0.0
      %1019 = vmatmul.mubr.f32.gmra.mrb[0].mxu0 %v813
      %v1020 = vpop.f32.mrb[0].mxu0
      %v1021 = vadd.f32 %v741, %v1020
      %v1022 = vpop.f32.mrb[0].mxu0
      %1023 = vmatprep.mubr.f32.mxu0 0.0
      %1024 = vmatmul.mubr.f32.gmra.mrb[0].mxu0 %v816
      %v1025 = vpop.f32.mrb[0].mxu0
      %v1026 = vadd.f32 %v741, %v1025
      %v1027 = vpop.f32.mrb[0].mxu0
      %1028 = vmatprep.mubr.f32.mxu0 0.0
      %1029 = vmatmul.mubr.f32.gmra.mrb[0].mxu0 %v819
      %v1030 = vpop.f32.mrb[0].mxu0
      %v1031 = vadd.f32 %v741, %v1030
      %v1032 = vpop.f32.mrb[0].mxu0
      %1033 = vmatprep.mubr.f32.mxu0 0.0
      %1034 = vmatmul.mubr.f32.gmra.mrb[0].mxu0 %v822
      %v1035 = vpop.f32.mrb[0].mxu0
      %v1036 = vadd.f32 %v741, %v1035
      %v1037 = vpop.f32.mrb[0].mxu0
      %1038 = vmatprep.mubr.f32.mxu0 0.0
      %1039 = vmatmul.mubr.f32.gmra.mrb[0].mxu0 %v825
      %v1040 = vpop.f32.mrb[0].mxu0
      %v1041 = vadd.f32 %v741, %v1040
      %v1042 = vpop.f32.mrb[0].mxu0
      %1043 = vmatprep.mubr.f32.mxu0 0.0
      %1044 = vmatmul.mubr.f32.gmra.mrb[0].mxu0 %v828
      %v1045 = vpop.f32.mrb[0].mxu0
      %v1046 = vadd.f32 %v741, %v1045
      %v1047 = vpop.f32.mrb[0].mxu0
      %1048 = vmatprep.mubr.f32.mxu0 0.0
      %1049 = vmatmul.mubr.f32.gmra.mrb[0].mxu0 %v831
      %v1050 = vpop.f32.mrb[0].mxu0
      %v1051 = vadd.f32 %v741, %v1050
      %v1052 = vpop.f32.mrb[0].mxu0
      %1053 = vmatprep.mubr.f32.mxu0 0.0
      %1054 = vmatmul.mubr.f32.gmra.mrb[0].mxu0 %v834
      %v1055 = vpop.f32.mrb[0].mxu0
      %v1056 = vadd.f32 %v741, %v1055
      %v1057 = vpop.f32.mrb[0].mxu0
      %1058 = vmatprep.mubr.f32.mxu0 0.0
      %1059 = vmatmul.mubr.f32.gmra.mrb[0].mxu0 %v837
      %v1060 = vpop.f32.mrb[0].mxu0
      %v1061 = vadd.f32 %v741, %v1060
      %v1062 = vpop.f32.mrb[0].mxu0
      %1063 = vdwg.mxu0
      %v1064 = vmax.f32 %v906, 0.0
      %v1065 = vmax.f32 %v911, 0.0
      %v1066 = vmax.f32 %v916, 0.0
      %v1067 = vmax.f32 %v921, 0.0
      %v1068 = vmax.f32 %v926, 0.0
      %v1069 = vmax.f32 %v931, 0.0
      %v1070 = vmax.f32 %v936, 0.0
      %v1071 = vmax.f32 %v941, 0.0
      %v1072 = vmax.f32 %v946, 0.0
      %v1073 = vmax.f32 %v951, 0.0
      %v1074 = vmax.f32 %v956, 0.0
      %v1075 = vmax.f32 %v961, 0.0
      %v1076 = vmax.f32 %v966, 0.0
      %v1077 = vmax.f32 %v971, 0.0
      %v1078 = vmax.f32 %v976, 0.0
      %v1079 = vmax.f32 %v981, 0.0
      %v1080 = vmax.f32 %v986, 0.0
      %v1081 = vmax.f32 %v991, 0.0
      %v1082 = vmax.f32 %v996, 0.0
      %v1083 = vmax.f32 %v1001, 0.0
      %v1084 = vmax.f32 %v1006, 0.0
      %v1085 = vmax.f32 %v1011, 0.0
      %v1086 = vmax.f32 %v1016, 0.0
      %v1087 = vmax.f32 %v1021, 0.0
      %v1088 = vmax.f32 %v1026, 0.0
      %v1089 = vmax.f32 %v1031, 0.0
      %v1090 = vmax.f32 %v1036, 0.0
      %v1091 = vmax.f32 %v1041, 0.0
      %v1092 = vmax.f32 %v1046, 0.0
      %v1093 = vmax.f32 %v1051, 0.0
      %v1094 = vmax.f32 %v1056, 0.0
      %v1095 = vmax.f32 %v1061, 0.0
      %v1096 = vld [vmem:[%s3] sm:$0xff]
      %v1097 = vld [vmem:[%s3 + $0x8] sm:$0xff]
      %v1098 = vld [vmem:[%s3 + $0x10] sm:$0xff]
      %v1099 = vld [vmem:[%s3 + $0x18] sm:$0xff]
      %v1100 = vld [vmem:[%s4] sm:$0x1]
      %v1101 = vlaneseq
      %v1102 = vshrl.u32 %v1101, 7
      %v1103 = vsub.s32 0, %v1102
      %v1104 = vrot.slane %v1100, %v1103
      %v1106 = vsel %vm314, %v1064, 0
      %v1109 = vsel %vm314, %v1065, 0
      %v1112 = vsel %vm314, %v1066, 0
      %v1115 = vsel %vm314, %v1067, 0
      %v1118 = vsel %vm314, %v1068, 0
      %v1121 = vsel %vm314, %v1069, 0
      %v1124 = vsel %vm314, %v1070, 0
      %v1127 = vsel %vm314, %v1071, 0
      %v1130 = vsel %vm314, %v1072, 0
      %v1133 = vsel %vm314, %v1073, 0
      %v1136 = vsel %vm314, %v1074, 0
      %v1139 = vsel %vm314, %v1075, 0
      %v1142 = vsel %vm314, %v1076, 0
      %v1145 = vsel %vm314, %v1077, 0
      %v1148 = vsel %vm314, %v1078, 0
      %v1151 = vsel %vm314, %v1079, 0
      %v1154 = vsel %vm314, %v1080, 0
      %v1157 = vsel %vm314, %v1081, 0
      %v1160 = vsel %vm314, %v1082, 0
      %v1163 = vsel %vm314, %v1083, 0
      %v1166 = vsel %vm314, %v1084, 0
      %v1169 = vsel %vm314, %v1085, 0
      %v1172 = vsel %vm314, %v1086, 0
      %v1175 = vsel %vm314, %v1087, 0
      %v1178 = vsel %vm314, %v1088, 0
      %v1181 = vsel %vm314, %v1089, 0
      %v1184 = vsel %vm314, %v1090, 0
      %v1187 = vsel %vm314, %v1091, 0
      %v1190 = vsel %vm314, %v1092, 0
      %v1193 = vsel %vm314, %v1093, 0
      %v1196 = vsel %vm314, %v1094, 0
      %v1199 = vsel %vm314, %v1095, 0
      %1201 = vmatprep.subr.mxu0 0.0
      %1202 = vmatpush1.msra.mxu0 %v1096
      %1203 = vmatprep.subr.mxu0 0.0
      %1204 = vmatpush1.msra.mxu0 %v1097
      %1205 = vmatprep.subr.mxu0 0.0
      %1206 = vmatpush1.msra.mxu0 %v1098
      %1207 = vmatprep.subr.mxu0 0.0
      %1208 = vmatpush1.msra.mxu0 %v1099
      %1209 = vmatprep.subr.mxu0 0.0
      %1210 = vmatpush1.msra.mxu0 0.0
      %1211 = vmatprep.subr.mxu0 0.0
      %1212 = vmatpush1.msra.mxu0 0.0
      %1213 = vmatprep.subr.mxu0 0.0
      %1214 = vmatpush1.msra.mxu0 0.0
      %1215 = vmatprep.subr.mxu0 0.0
      %1216 = vmatpush1.msra.mxu0 0.0
      %1217 = vmatprep.subr.mxu0 0.0
      %1218 = vmatpush1.msra.mxu0 0.0
      %1219 = vmatprep.subr.mxu0 0.0
      %1220 = vmatpush1.msra.mxu0 0.0
      %1221 = vmatprep.subr.mxu0 0.0
      %1222 = vmatpush1.msra.mxu0 0.0
      %1223 = vmatprep.subr.mxu0 0.0
      %1224 = vmatpush1.msra.mxu0 0.0
      %1225 = vmatprep.subr.mxu0 0.0
      %1226 = vmatpush1.msra.mxu0 0.0
      %1227 = vmatprep.subr.mxu0 0.0
      %1228 = vmatpush1.msra.mxu0 0.0
      %1229 = vmatprep.subr.mxu0 0.0
      %1230 = vmatpush1.msra.mxu0 0.0
      %1231 = vmatprep.subr.mxu0 0.0
      %1232 = vmatpush1.msra.mxu0 0.0
      %1233 = vmatprep.subr.mxu0 0.0
      %1234 = vmatpush1.msra.mxu0 0.0
      %1235 = vmatprep.subr.mxu0 0.0
      %1236 = vmatpush1.msra.mxu0 0.0
      %1237 = vmatprep.subr.mxu0 0.0
      %1238 = vmatpush1.msra.mxu0 0.0
      %1239 = vmatprep.subr.mxu0 0.0
      %1240 = vmatpush1.msra.mxu0 0.0
      %1241 = vmatprep.subr.mxu0 0.0
      %1242 = vmatpush1.msra.mxu0 0.0
      %1243 = vmatprep.subr.mxu0 0.0
      %1244 = vmatpush1.msra.mxu0 0.0
      %1245 = vmatprep.subr.mxu0 0.0
      %1246 = vmatpush1.msra.mxu0 0.0
      %1247 = vmatprep.subr.mxu0 0.0
      %1248 = vmatpush1.msra.mxu0 0.0
      %1249 = vmatprep.subr.mxu0 0.0
      %1250 = vmatpush1.msra.mxu0 0.0
      %1251 = vmatprep.subr.mxu0 0.0
      %1252 = vmatpush1.msra.mxu0 0.0
      %1253 = vmatprep.subr.mxu0 0.0
      %1254 = vmatpush1.msra.mxu0 0.0
      %1255 = vmatprep.subr.mxu0 0.0
      %1256 = vmatpush1.msra.mxu0 0.0
      %1257 = vmatprep.subr.mxu0 0.0
      %1258 = vmatpush1.msra.mxu0 0.0
      %1259 = vmatprep.subr.mxu0 0.0
      %1260 = vmatpush1.msra.mxu0 0.0
      %1261 = vmatprep.subr.mxu0 0.0
      %1262 = vmatpush1.msra.mxu0 0.0
      %1263 = vmatprep.subr.mxu0 0.0
      %1264 = vmatpush1.msra.mxu0 0.0
      %1265 = vmatprep.mubr.f32.mxu0 0.0
      %1266 = vmatmul.mubr.f32.gmra.mrb[0].mxu0 %v1106
      %v1267 = vpop.f32.mrb[0].mxu0
      %v1268 = vadd.f32 %v1104, %v1267
      %v1269 = vpop.f32.mrb[0].mxu0
      %1270 = vmatprep.mubr.f32.mxu0 0.0
      %1271 = vmatmul.mubr.f32.gmra.mrb[0].mxu0 %v1109
      %v1272 = vpop.f32.mrb[0].mxu0
      %v1273 = vadd.f32 %v1104, %v1272
      %v1274 = vpop.f32.mrb[0].mxu0
      %1275 = vmatprep.mubr.f32.mxu0 0.0
      %1276 = vmatmul.mubr.f32.gmra.mrb[0].mxu0 %v1112
      %v1277 = vpop.f32.mrb[0].mxu0
      %v1278 = vadd.f32 %v1104, %v1277
      %v1279 = vpop.f32.mrb[0].mxu0
      %1280 = vmatprep.mubr.f32.mxu0 0.0
      %1281 = vmatmul.mubr.f32.gmra.mrb[0].mxu0 %v1115
      %v1282 = vpop.f32.mrb[0].mxu0
      %v1283 = vadd.f32 %v1104, %v1282
      %v1284 = vpop.f32.mrb[0].mxu0
      %1285 = vmatprep.mubr.f32.mxu0 0.0
      %1286 = vmatmul.mubr.f32.gmra.mrb[0].mxu0 %v1118
      %v1287 = vpop.f32.mrb[0].mxu0
      %v1288 = vadd.f32 %v1104, %v1287
      %v1289 = vpop.f32.mrb[0].mxu0
      %1290 = vmatprep.mubr.f32.mxu0 0.0
      %1291 = vmatmul.mubr.f32.gmra.mrb[0].mxu0 %v1121
      %v1292 = vpop.f32.mrb[0].mxu0
      %v1293 = vadd.f32 %v1104, %v1292
      %v1294 = vpop.f32.mrb[0].mxu0
      %1295 = vmatprep.mubr.f32.mxu0 0.0
      %1296 = vmatmul.mubr.f32.gmra.mrb[0].mxu0 %v1124
      %v1297 = vpop.f32.mrb[0].mxu0
      %v1298 = vadd.f32 %v1104, %v1297
      %v1299 = vpop.f32.mrb[0].mxu0
      %1300 = vmatprep.mubr.f32.mxu0 0.0
      %1301 = vmatmul.mubr.f32.gmra.mrb[0].mxu0 %v1127
      %v1302 = vpop.f32.mrb[0].mxu0
      %v1303 = vadd.f32 %v1104, %v1302
      %v1304 = vpop.f32.mrb[0].mxu0
      %1305 = vmatprep.mubr.f32.mxu0 0.0
      %1306 = vmatmul.mubr.f32.gmra.mrb[0].mxu0 %v1130
      %v1307 = vpop.f32.mrb[0].mxu0
      %v1308 = vadd.f32 %v1104, %v1307
      %v1309 = vpop.f32.mrb[0].mxu0
      %1310 = vmatprep.mubr.f32.mxu0 0.0
      %1311 = vmatmul.mubr.f32.gmra.mrb[0].mxu0 %v1133
      %v1312 = vpop.f32.mrb[0].mxu0
      %v1313 = vadd.f32 %v1104, %v1312
      %v1314 = vpop.f32.mrb[0].mxu0
      %1315 = vmatprep.mubr.f32.mxu0 0.0
      %1316 = vmatmul.mubr.f32.gmra.mrb[0].mxu0 %v1136
      %v1317 = vpop.f32.mrb[0].mxu0
      %v1318 = vadd.f32 %v1104, %v1317
      %v1319 = vpop.f32.mrb[0].mxu0
      %1320 = vmatprep.mubr.f32.mxu0 0.0
      %1321 = vmatmul.mubr.f32.gmra.mrb[0].mxu0 %v1139
      %v1322 = vpop.f32.mrb[0].mxu0
      %v1323 = vadd.f32 %v1104, %v1322
      %v1324 = vpop.f32.mrb[0].mxu0
      %1325 = vmatprep.mubr.f32.mxu0 0.0
      %1326 = vmatmul.mubr.f32.gmra.mrb[0].mxu0 %v1142
      %v1327 = vpop.f32.mrb[0].mxu0
      %v1328 = vadd.f32 %v1104, %v1327
      %v1329 = vpop.f32.mrb[0].mxu0
      %1330 = vmatprep.mubr.f32.mxu0 0.0
      %1331 = vmatmul.mubr.f32.gmra.mrb[0].mxu0 %v1145
      %v1332 = vpop.f32.mrb[0].mxu0
      %v1333 = vadd.f32 %v1104, %v1332
      %v1334 = vpop.f32.mrb[0].mxu0
      %1335 = vmatprep.mubr.f32.mxu0 0.0
      %1336 = vmatmul.mubr.f32.gmra.mrb[0].mxu0 %v1148
      %v1337 = vpop.f32.mrb[0].mxu0
      %v1338 = vadd.f32 %v1104, %v1337
      %v1339 = vpop.f32.mrb[0].mxu0
      %1340 = vmatprep.mubr.f32.mxu0 0.0
      %1341 = vmatmul.mubr.f32.gmra.mrb[0].mxu0 %v1151
      %v1342 = vpop.f32.mrb[0].mxu0
      %v1343 = vadd.f32 %v1104, %v1342
      %v1344 = vpop.f32.mrb[0].mxu0
      %1345 = vmatprep.mubr.f32.mxu0 0.0
      %1346 = vmatmul.mubr.f32.gmra.mrb[0].mxu0 %v1154
      %v1347 = vpop.f32.mrb[0].mxu0
      %v1348 = vadd.f32 %v1104, %v1347
      %v1349 = vpop.f32.mrb[0].mxu0
      %1350 = vmatprep.mubr.f32.mxu0 0.0
      %1351 = vmatmul.mubr.f32.gmra.mrb[0].mxu0 %v1157
      %v1352 = vpop.f32.mrb[0].mxu0
      %v1353 = vadd.f32 %v1104, %v1352
      %v1354 = vpop.f32.mrb[0].mxu0
      %1355 = vmatprep.mubr.f32.mxu0 0.0
      %1356 = vmatmul.mubr.f32.gmra.mrb[0].mxu0 %v1160
      %v1357 = vpop.f32.mrb[0].mxu0
      %v1358 = vadd.f32 %v1104, %v1357
      %v1359 = vpop.f32.mrb[0].mxu0
      %1360 = vmatprep.mubr.f32.mxu0 0.0
      %1361 = vmatmul.mubr.f32.gmra.mrb[0].mxu0 %v1163
      %v1362 = vpop.f32.mrb[0].mxu0
      %v1363 = vadd.f32 %v1104, %v1362
      %v1364 = vpop.f32.mrb[0].mxu0
      %1365 = vmatprep.mubr.f32.mxu0 0.0
      %1366 = vmatmul.mubr.f32.gmra.mrb[0].mxu0 %v1166
      %v1367 = vpop.f32.mrb[0].mxu0
      %v1368 = vadd.f32 %v1104, %v1367
      %v1369 = vpop.f32.mrb[0].mxu0
      %1370 = vmatprep.mubr.f32.mxu0 0.0
      %1371 = vmatmul.mubr.f32.gmra.mrb[0].mxu0 %v1169
      %v1372 = vpop.f32.mrb[0].mxu0
      %v1373 = vadd.f32 %v1104, %v1372
      %v1374 = vpop.f32.mrb[0].mxu0
      %1375 = vmatprep.mubr.f32.mxu0 0.0
      %1376 = vmatmul.mubr.f32.gmra.mrb[0].mxu0 %v1172
      %v1377 = vpop.f32.mrb[0].mxu0
      %v1378 = vadd.f32 %v1104, %v1377
      %v1379 = vpop.f32.mrb[0].mxu0
      %1380 = vmatprep.mubr.f32.mxu0 0.0
      %1381 = vmatmul.mubr.f32.gmra.mrb[0].mxu0 %v1175
      %v1382 = vpop.f32.mrb[0].mxu0
      %v1383 = vadd.f32 %v1104, %v1382
      %v1384 = vpop.f32.mrb[0].mxu0
      %1385 = vmatprep.mubr.f32.mxu0 0.0
      %1386 = vmatmul.mubr.f32.gmra.mrb[0].mxu0 %v1178
      %v1387 = vpop.f32.mrb[0].mxu0
      %v1388 = vadd.f32 %v1104, %v1387
      %v1389 = vpop.f32.mrb[0].mxu0
      %1390 = vmatprep.mubr.f32.mxu0 0.0
      %1391 = vmatmul.mubr.f32.gmra.mrb[0].mxu0 %v1181
      %v1392 = vpop.f32.mrb[0].mxu0
      %v1393 = vadd.f32 %v1104, %v1392
      %v1394 = vpop.f32.mrb[0].mxu0
      %1395 = vmatprep.mubr.f32.mxu0 0.0
      %1396 = vmatmul.mubr.f32.gmra.mrb[0].mxu0 %v1184
      %v1397 = vpop.f32.mrb[0].mxu0
      %v1398 = vadd.f32 %v1104, %v1397
      %v1399 = vpop.f32.mrb[0].mxu0
      %1400 = vmatprep.mubr.f32.mxu0 0.0
      %1401 = vmatmul.mubr.f32.gmra.mrb[0].mxu0 %v1187
      %v1402 = vpop.f32.mrb[0].mxu0
      %v1403 = vadd.f32 %v1104, %v1402
      %v1404 = vpop.f32.mrb[0].mxu0
      %1405 = vmatprep.mubr.f32.mxu0 0.0
      %1406 = vmatmul.mubr.f32.gmra.mrb[0].mxu0 %v1190
      %v1407 = vpop.f32.mrb[0].mxu0
      %v1408 = vadd.f32 %v1104, %v1407
      %v1409 = vpop.f32.mrb[0].mxu0
      %1410 = vmatprep.mubr.f32.mxu0 0.0
      %1411 = vmatmul.mubr.f32.gmra.mrb[0].mxu0 %v1193
      %v1412 = vpop.f32.mrb[0].mxu0
      %v1413 = vadd.f32 %v1104, %v1412
      %v1414 = vpop.f32.mrb[0].mxu0
      %1415 = vmatprep.mubr.f32.mxu0 0.0
      %1416 = vmatmul.mubr.f32.gmra.mrb[0].mxu0 %v1196
      %v1417 = vpop.f32.mrb[0].mxu0
      %v1418 = vadd.f32 %v1104, %v1417
      %v1419 = vpop.f32.mrb[0].mxu0
      %1420 = vmatprep.mubr.f32.mxu0 0.0
      %1421 = vmatmul.mubr.f32.gmra.mrb[0].mxu0 %v1199
      %v1422 = vpop.f32.mrb[0].mxu0
      %v1423 = vadd.f32 %v1104, %v1422
      %v1424 = vpop.f32.mrb[0].mxu0
      %1425 = vdwg.mxu0
      %v1426 = vmax.f32 %v1268, 0.0
      %v1427 = vmax.f32 %v1273, 0.0
      %v1428 = vmax.f32 %v1278, 0.0
      %v1429 = vmax.f32 %v1283, 0.0
      %v1430 = vmax.f32 %v1288, 0.0
      %v1431 = vmax.f32 %v1293, 0.0
      %v1432 = vmax.f32 %v1298, 0.0
      %v1433 = vmax.f32 %v1303, 0.0
      %v1434 = vmax.f32 %v1308, 0.0
      %v1435 = vmax.f32 %v1313, 0.0
      %v1436 = vmax.f32 %v1318, 0.0
      %v1437 = vmax.f32 %v1323, 0.0
      %v1438 = vmax.f32 %v1328, 0.0
      %v1439 = vmax.f32 %v1333, 0.0
      %v1440 = vmax.f32 %v1338, 0.0
      %v1441 = vmax.f32 %v1343, 0.0
      %v1442 = vmax.f32 %v1348, 0.0
      %v1443 = vmax.f32 %v1353, 0.0
      %v1444 = vmax.f32 %v1358, 0.0
      %v1445 = vmax.f32 %v1363, 0.0
      %v1446 = vmax.f32 %v1368, 0.0
      %v1447 = vmax.f32 %v1373, 0.0
      %v1448 = vmax.f32 %v1378, 0.0
      %v1449 = vmax.f32 %v1383, 0.0
      %v1450 = vmax.f32 %v1388, 0.0
      %v1451 = vmax.f32 %v1393, 0.0
      %v1452 = vmax.f32 %v1398, 0.0
      %v1453 = vmax.f32 %v1403, 0.0
      %v1454 = vmax.f32 %v1408, 0.0
      %v1455 = vmax.f32 %v1413, 0.0
      %v1456 = vmax.f32 %v1418, 0.0
      %v1457 = vmax.f32 %v1423, 0.0
      %s1458 = scalar_lea.vmem %s3, 32
      %v1459 = vld [vmem:[%s1458] sm:$0xff]
      %v1460 = vld [vmem:[%s1458 + $0x8] sm:$0xff]
      %v1461 = vld [vmem:[%s1458 + $0x10] sm:$0xff]
      %v1462 = vld [vmem:[%s1458 + $0x18] sm:$0xff]
      %v1463 = vld [vmem:[%s4 + $0x1] sm:$0x1]
      %v1464 = vlaneseq
      %v1465 = vshrl.u32 %v1464, 7
      %v1466 = vsub.s32 0, %v1465
      %v1467 = vrot.slane %v1463, %v1466
      %v1469 = vsel %vm314, %v1426, 0
      %v1472 = vsel %vm314, %v1427, 0
      %v1475 = vsel %vm314, %v1428, 0
      %v1478 = vsel %vm314, %v1429, 0
      %v1481 = vsel %vm314, %v1430, 0
      %v1484 = vsel %vm314, %v1431, 0
      %v1487 = vsel %vm314, %v1432, 0
      %v1490 = vsel %vm314, %v1433, 0
      %v1493 = vsel %vm314, %v1434, 0
      %v1496 = vsel %vm314, %v1435, 0
      %v1499 = vsel %vm314, %v1436, 0
      %v1502 = vsel %vm314, %v1437, 0
      %v1505 = vsel %vm314, %v1438, 0
      %v1508 = vsel %vm314, %v1439, 0
      %v1511 = vsel %vm314, %v1440, 0
      %v1514 = vsel %vm314, %v1441, 0
      %v1517 = vsel %vm314, %v1442, 0
      %v1520 = vsel %vm314, %v1443, 0
      %v1523 = vsel %vm314, %v1444, 0
      %v1526 = vsel %vm314, %v1445, 0
      %v1529 = vsel %vm314, %v1446, 0
      %v1532 = vsel %vm314, %v1447, 0
      %v1535 = vsel %vm314, %v1448, 0
      %v1538 = vsel %vm314, %v1449, 0
      %v1541 = vsel %vm314, %v1450, 0
      %v1544 = vsel %vm314, %v1451, 0
      %v1547 = vsel %vm314, %v1452, 0
      %v1550 = vsel %vm314, %v1453, 0
      %v1553 = vsel %vm314, %v1454, 0
      %v1556 = vsel %vm314, %v1455, 0
      %v1559 = vsel %vm314, %v1456, 0
      %v1562 = vsel %vm314, %v1457, 0
      %1564 = vmatprep.subr.mxu0 0.0
      %1565 = vmatpush1.msra.mxu0 %v1459
      %1566 = vmatprep.subr.mxu0 0.0
      %1567 = vmatpush1.msra.mxu0 %v1460
      %1568 = vmatprep.subr.mxu0 0.0
      %1569 = vmatpush1.msra.mxu0 %v1461
      %1570 = vmatprep.subr.mxu0 0.0
      %1571 = vmatpush1.msra.mxu0 %v1462
      %1572 = vmatprep.subr.mxu0 0.0
      %1573 = vmatpush1.msra.mxu0 0.0
      %1574 = vmatprep.subr.mxu0 0.0
      %1575 = vmatpush1.msra.mxu0 0.0
      %1576 = vmatprep.subr.mxu0 0.0
      %1577 = vmatpush1.msra.mxu0 0.0
      %1578 = vmatprep.subr.mxu0 0.0
      %1579 = vmatpush1.msra.mxu0 0.0
      %1580 = vmatprep.subr.mxu0 0.0
      %1581 = vmatpush1.msra.mxu0 0.0
      %1582 = vmatprep.subr.mxu0 0.0
      %1583 = vmatpush1.msra.mxu0 0.0
      %1584 = vmatprep.subr.mxu0 0.0
      %1585 = vmatpush1.msra.mxu0 0.0
      %1586 = vmatprep.subr.mxu0 0.0
      %1587 = vmatpush1.msra.mxu0 0.0
      %1588 = vmatprep.subr.mxu0 0.0
      %1589 = vmatpush1.msra.mxu0 0.0
      %1590 = vmatprep.subr.mxu0 0.0
      %1591 = vmatpush1.msra.mxu0 0.0
      %1592 = vmatprep.subr.mxu0 0.0
      %1593 = vmatpush1.msra.mxu0 0.0
      %1594 = vmatprep.subr.mxu0 0.0
      %1595 = vmatpush1.msra.mxu0 0.0
      %1596 = vmatprep.subr.mxu0 0.0
      %1597 = vmatpush1.msra.mxu0 0.0
      %1598 = vmatprep.subr.mxu0 0.0
      %1599 = vmatpush1.msra.mxu0 0.0
      %1600 = vmatprep.subr.mxu0 0.0
      %1601 = vmatpush1.msra.mxu0 0.0
      %1602 = vmatprep.subr.mxu0 0.0
      %1603 = vmatpush1.msra.mxu0 0.0
      %1604 = vmatprep.subr.mxu0 0.0
      %1605 = vmatpush1.msra.mxu0 0.0
      %1606 = vmatprep.subr.mxu0 0.0
      %1607 = vmatpush1.msra.mxu0 0.0
      %1608 = vmatprep.subr.mxu0 0.0
      %1609 = vmatpush1.msra.mxu0 0.0
      %1610 = vmatprep.subr.mxu0 0.0
      %1611 = vmatpush1.msra.mxu0 0.0
      %1612 = vmatprep.subr.mxu0 0.0
      %1613 = vmatpush1.msra.mxu0 0.0
      %1614 = vmatprep.subr.mxu0 0.0
      %1615 = vmatpush1.msra.mxu0 0.0
      %1616 = vmatprep.subr.mxu0 0.0
      %1617 = vmatpush1.msra.mxu0 0.0
      %1618 = vmatprep.subr.mxu0 0.0
      %1619 = vmatpush1.msra.mxu0 0.0
      %1620 = vmatprep.subr.mxu0 0.0
      %1621 = vmatpush1.msra.mxu0 0.0
      %1622 = vmatprep.subr.mxu0 0.0
      %1623 = vmatpush1.msra.mxu0 0.0
      %1624 = vmatprep.subr.mxu0 0.0
      %1625 = vmatpush1.msra.mxu0 0.0
      %1626 = vmatprep.subr.mxu0 0.0
      %1627 = vmatpush1.msra.mxu0 0.0
      %1628 = vmatprep.mubr.f32.mxu0 0.0
      %1629 = vmatmul.mubr.f32.gmra.mrb[0].mxu0 %v1469
      %v1630 = vpop.f32.mrb[0].mxu0
      %v1631 = vadd.f32 %v1467, %v1630
      %v1632 = vpop.f32.mrb[0].mxu0
      %1633 = vmatprep.mubr.f32.mxu0 0.0
      %1634 = vmatmul.mubr.f32.gmra.mrb[0].mxu0 %v1472
      %v1635 = vpop.f32.mrb[0].mxu0
      %v1636 = vadd.f32 %v1467, %v1635
      %v1637 = vpop.f32.mrb[0].mxu0
      %1638 = vmatprep.mubr.f32.mxu0 0.0
      %1639 = vmatmul.mubr.f32.gmra.mrb[0].mxu0 %v1475
      %v1640 = vpop.f32.mrb[0].mxu0
      %v1641 = vadd.f32 %v1467, %v1640
      %v1642 = vpop.f32.mrb[0].mxu0
      %1643 = vmatprep.mubr.f32.mxu0 0.0
      %1644 = vmatmul.mubr.f32.gmra.mrb[0].mxu0 %v1478
      %v1645 = vpop.f32.mrb[0].mxu0
      %v1646 = vadd.f32 %v1467, %v1645
      %v1647 = vpop.f32.mrb[0].mxu0
      %1648 = vmatprep.mubr.f32.mxu0 0.0
      %1649 = vmatmul.mubr.f32.gmra.mrb[0].mxu0 %v1481
      %v1650 = vpop.f32.mrb[0].mxu0
      %v1651 = vadd.f32 %v1467, %v1650
      %v1652 = vpop.f32.mrb[0].mxu0
      %1653 = vmatprep.mubr.f32.mxu0 0.0
      %1654 = vmatmul.mubr.f32.gmra.mrb[0].mxu0 %v1484
      %v1655 = vpop.f32.mrb[0].mxu0
      %v1656 = vadd.f32 %v1467, %v1655
      %v1657 = vpop.f32.mrb[0].mxu0
      %1658 = vmatprep.mubr.f32.mxu0 0.0
      %1659 = vmatmul.mubr.f32.gmra.mrb[0].mxu0 %v1487
      %v1660 = vpop.f32.mrb[0].mxu0
      %v1661 = vadd.f32 %v1467, %v1660
      %v1662 = vpop.f32.mrb[0].mxu0
      %1663 = vmatprep.mubr.f32.mxu0 0.0
      %1664 = vmatmul.mubr.f32.gmra.mrb[0].mxu0 %v1490
      %v1665 = vpop.f32.mrb[0].mxu0
      %v1666 = vadd.f32 %v1467, %v1665
      %v1667 = vpop.f32.mrb[0].mxu0
      %1668 = vmatprep.mubr.f32.mxu0 0.0
      %1669 = vmatmul.mubr.f32.gmra.mrb[0].mxu0 %v1493
      %v1670 = vpop.f32.mrb[0].mxu0
      %v1671 = vadd.f32 %v1467, %v1670
      %v1672 = vpop.f32.mrb[0].mxu0
      %1673 = vmatprep.mubr.f32.mxu0 0.0
      %1674 = vmatmul.mubr.f32.gmra.mrb[0].mxu0 %v1496
      %v1675 = vpop.f32.mrb[0].mxu0
      %v1676 = vadd.f32 %v1467, %v1675
      %v1677 = vpop.f32.mrb[0].mxu0
      %1678 = vmatprep.mubr.f32.mxu0 0.0
      %1679 = vmatmul.mubr.f32.gmra.mrb[0].mxu0 %v1499
      %v1680 = vpop.f32.mrb[0].mxu0
      %v1681 = vadd.f32 %v1467, %v1680
      %v1682 = vpop.f32.mrb[0].mxu0
      %1683 = vmatprep.mubr.f32.mxu0 0.0
      %1684 = vmatmul.mubr.f32.gmra.mrb[0].mxu0 %v1502
      %v1685 = vpop.f32.mrb[0].mxu0
      %v1686 = vadd.f32 %v1467, %v1685
      %v1687 = vpop.f32.mrb[0].mxu0
      %1688 = vmatprep.mubr.f32.mxu0 0.0
      %1689 = vmatmul.mubr.f32.gmra.mrb[0].mxu0 %v1505
      %v1690 = vpop.f32.mrb[0].mxu0
      %v1691 = vadd.f32 %v1467, %v1690
      %v1692 = vpop.f32.mrb[0].mxu0
      %1693 = vmatprep.mubr.f32.mxu0 0.0
      %1694 = vmatmul.mubr.f32.gmra.mrb[0].mxu0 %v1508
      %v1695 = vpop.f32.mrb[0].mxu0
      %v1696 = vadd.f32 %v1467, %v1695
      %v1697 = vpop.f32.mrb[0].mxu0
      %1698 = vmatprep.mubr.f32.mxu0 0.0
      %1699 = vmatmul.mubr.f32.gmra.mrb[0].mxu0 %v1511
      %v1700 = vpop.f32.mrb[0].mxu0
      %v1701 = vadd.f32 %v1467, %v1700
      %v1702 = vpop.f32.mrb[0].mxu0
      %1703 = vmatprep.mubr.f32.mxu0 0.0
      %1704 = vmatmul.mubr.f32.gmra.mrb[0].mxu0 %v1514
      %v1705 = vpop.f32.mrb[0].mxu0
      %v1706 = vadd.f32 %v1467, %v1705
      %v1707 = vpop.f32.mrb[0].mxu0
      %1708 = vmatprep.mubr.f32.mxu0 0.0
      %1709 = vmatmul.mubr.f32.gmra.mrb[0].mxu0 %v1517
      %v1710 = vpop.f32.mrb[0].mxu0
      %v1711 = vadd.f32 %v1467, %v1710
      %v1712 = vpop.f32.mrb[0].mxu0
      %1713 = vmatprep.mubr.f32.mxu0 0.0
      %1714 = vmatmul.mubr.f32.gmra.mrb[0].mxu0 %v1520
      %v1715 = vpop.f32.mrb[0].mxu0
      %v1716 = vadd.f32 %v1467, %v1715
      %v1717 = vpop.f32.mrb[0].mxu0
      %1718 = vmatprep.mubr.f32.mxu0 0.0
      %1719 = vmatmul.mubr.f32.gmra.mrb[0].mxu0 %v1523
      %v1720 = vpop.f32.mrb[0].mxu0
      %v1721 = vadd.f32 %v1467, %v1720
      %v1722 = vpop.f32.mrb[0].mxu0
      %1723 = vmatprep.mubr.f32.mxu0 0.0
      %1724 = vmatmul.mubr.f32.gmra.mrb[0].mxu0 %v1526
      %v1725 = vpop.f32.mrb[0].mxu0
      %v1726 = vadd.f32 %v1467, %v1725
      %v1727 = vpop.f32.mrb[0].mxu0
      %1728 = vmatprep.mubr.f32.mxu0 0.0
      %1729 = vmatmul.mubr.f32.gmra.mrb[0].mxu0 %v1529
      %v1730 = vpop.f32.mrb[0].mxu0
      %v1731 = vadd.f32 %v1467, %v1730
      %v1732 = vpop.f32.mrb[0].mxu0
      %1733 = vmatprep.mubr.f32.mxu0 0.0
      %1734 = vmatmul.mubr.f32.gmra.mrb[0].mxu0 %v1532
      %v1735 = vpop.f32.mrb[0].mxu0
      %v1736 = vadd.f32 %v1467, %v1735
      %v1737 = vpop.f32.mrb[0].mxu0
      %1738 = vmatprep.mubr.f32.mxu0 0.0
      %1739 = vmatmul.mubr.f32.gmra.mrb[0].mxu0 %v1535
      %v1740 = vpop.f32.mrb[0].mxu0
      %v1741 = vadd.f32 %v1467, %v1740
      %v1742 = vpop.f32.mrb[0].mxu0
      %1743 = vmatprep.mubr.f32.mxu0 0.0
      %1744 = vmatmul.mubr.f32.gmra.mrb[0].mxu0 %v1538
      %v1745 = vpop.f32.mrb[0].mxu0
      %v1746 = vadd.f32 %v1467, %v1745
      %v1747 = vpop.f32.mrb[0].mxu0
      %1748 = vmatprep.mubr.f32.mxu0 0.0
      %1749 = vmatmul.mubr.f32.gmra.mrb[0].mxu0 %v1541
      %v1750 = vpop.f32.mrb[0].mxu0
      %v1751 = vadd.f32 %v1467, %v1750
      %v1752 = vpop.f32.mrb[0].mxu0
      %1753 = vmatprep.mubr.f32.mxu0 0.0
      %1754 = vmatmul.mubr.f32.gmra.mrb[0].mxu0 %v1544
      %v1755 = vpop.f32.mrb[0].mxu0
      %v1756 = vadd.f32 %v1467, %v1755
      %v1757 = vpop.f32.mrb[0].mxu0
      %1758 = vmatprep.mubr.f32.mxu0 0.0
      %1759 = vmatmul.mubr.f32.gmra.mrb[0].mxu0 %v1547
      %v1760 = vpop.f32.mrb[0].mxu0
      %v1761 = vadd.f32 %v1467, %v1760
      %v1762 = vpop.f32.mrb[0].mxu0
      %1763 = vmatprep.mubr.f32.mxu0 0.0
      %1764 = vmatmul.mubr.f32.gmra.mrb[0].mxu0 %v1550
      %v1765 = vpop.f32.mrb[0].mxu0
      %v1766 = vadd.f32 %v1467, %v1765
      %v1767 = vpop.f32.mrb[0].mxu0
      %1768 = vmatprep.mubr.f32.mxu0 0.0
      %1769 = vmatmul.mubr.f32.gmra.mrb[0].mxu0 %v1553
      %v1770 = vpop.f32.mrb[0].mxu0
      %v1771 = vadd.f32 %v1467, %v1770
      %v1772 = vpop.f32.mrb[0].mxu0
      %1773 = vmatprep.mubr.f32.mxu0 0.0
      %1774 = vmatmul.mubr.f32.gmra.mrb[0].mxu0 %v1556
      %v1775 = vpop.f32.mrb[0].mxu0
      %v1776 = vadd.f32 %v1467, %v1775
      %v1777 = vpop.f32.mrb[0].mxu0
      %1778 = vmatprep.mubr.f32.mxu0 0.0
      %1779 = vmatmul.mubr.f32.gmra.mrb[0].mxu0 %v1559
      %v1780 = vpop.f32.mrb[0].mxu0
      %v1781 = vadd.f32 %v1467, %v1780
      %v1782 = vpop.f32.mrb[0].mxu0
      %1783 = vmatprep.mubr.f32.mxu0 0.0
      %1784 = vmatmul.mubr.f32.gmra.mrb[0].mxu0 %v1562
      %v1785 = vpop.f32.mrb[0].mxu0
      %v1786 = vadd.f32 %v1467, %v1785
      %v1787 = vpop.f32.mrb[0].mxu0
      %1788 = vdwg.mxu0
      %v1789 = vmax.f32 %v1631, 0.0
      %v1790 = vmax.f32 %v1636, 0.0
      %v1791 = vmax.f32 %v1641, 0.0
      %v1792 = vmax.f32 %v1646, 0.0
      %v1793 = vmax.f32 %v1651, 0.0
      %v1794 = vmax.f32 %v1656, 0.0
      %v1795 = vmax.f32 %v1661, 0.0
      %v1796 = vmax.f32 %v1666, 0.0
      %v1797 = vmax.f32 %v1671, 0.0
      %v1798 = vmax.f32 %v1676, 0.0
      %v1799 = vmax.f32 %v1681, 0.0
      %v1800 = vmax.f32 %v1686, 0.0
      %v1801 = vmax.f32 %v1691, 0.0
      %v1802 = vmax.f32 %v1696, 0.0
      %v1803 = vmax.f32 %v1701, 0.0
      %v1804 = vmax.f32 %v1706, 0.0
      %v1805 = vmax.f32 %v1711, 0.0
      %v1806 = vmax.f32 %v1716, 0.0
      %v1807 = vmax.f32 %v1721, 0.0
      %v1808 = vmax.f32 %v1726, 0.0
      %v1809 = vmax.f32 %v1731, 0.0
      %v1810 = vmax.f32 %v1736, 0.0
      %v1811 = vmax.f32 %v1741, 0.0
      %v1812 = vmax.f32 %v1746, 0.0
      %v1813 = vmax.f32 %v1751, 0.0
      %v1814 = vmax.f32 %v1756, 0.0
      %v1815 = vmax.f32 %v1761, 0.0
      %v1816 = vmax.f32 %v1766, 0.0
      %v1817 = vmax.f32 %v1771, 0.0
      %v1818 = vmax.f32 %v1776, 0.0
      %v1819 = vmax.f32 %v1781, 0.0
      %v1820 = vmax.f32 %v1786, 0.0
      %v1821 = vld [vmem:[%s5] sm:$0xff]
      %v1822 = vld [vmem:[%s5 + $0x8] sm:$0xff]
      %v1823 = vld [vmem:[%s5 + $0x10] sm:$0xff]
      %v1824 = vld [vmem:[%s5 + $0x18] sm:$0xff]
      %v1825 = vld [vmem:[%s6] sm:$0x1]
      %v1827 = vlaneseq
      %v1828 = vshrl.u32 %v1827, 7
      %v1829 = vsub.s32 0, %v1828
      %v1830 = vrot.slane %v1825, %v1829
      %v1833 = vsel %vm314, %v1789, 0
      %v1836 = vsel %vm314, %v1790, 0
      %v1839 = vsel %vm314, %v1791, 0
      %v1842 = vsel %vm314, %v1792, 0
      %v1845 = vsel %vm314, %v1793, 0
      %v1848 = vsel %vm314, %v1794, 0
      %v1851 = vsel %vm314, %v1795, 0
      %v1854 = vsel %vm314, %v1796, 0
      %v1857 = vsel %vm314, %v1797, 0
      %v1860 = vsel %vm314, %v1798, 0
      %v1863 = vsel %vm314, %v1799, 0
      %v1866 = vsel %vm314, %v1800, 0
      %v1869 = vsel %vm314, %v1801, 0
      %v1872 = vsel %vm314, %v1802, 0
      %v1875 = vsel %vm314, %v1803, 0
      %v1878 = vsel %vm314, %v1804, 0
      %v1881 = vsel %vm314, %v1805, 0
      %v1884 = vsel %vm314, %v1806, 0
      %v1887 = vsel %vm314, %v1807, 0
      %v1890 = vsel %vm314, %v1808, 0
      %v1893 = vsel %vm314, %v1809, 0
      %v1896 = vsel %vm314, %v1810, 0
      %v1899 = vsel %vm314, %v1811, 0
      %v1902 = vsel %vm314, %v1812, 0
      %v1905 = vsel %vm314, %v1813, 0
      %v1908 = vsel %vm314, %v1814, 0
      %v1911 = vsel %vm314, %v1815, 0
      %v1914 = vsel %vm314, %v1816, 0
      %v1917 = vsel %vm314, %v1817, 0
      %v1920 = vsel %vm314, %v1818, 0
      %v1923 = vsel %vm314, %v1819, 0
      %v1926 = vsel %vm314, %v1820, 0
      %1928 = vmatprep.subr.mxu0 0.0
      %1929 = vmatpush1.msra.mxu0 %v1821
      %1930 = vmatprep.subr.mxu0 0.0
      %1931 = vmatpush1.msra.mxu0 %v1822
      %1932 = vmatprep.subr.mxu0 0.0
      %1933 = vmatpush1.msra.mxu0 %v1823
      %1934 = vmatprep.subr.mxu0 0.0
      %1935 = vmatpush1.msra.mxu0 %v1824
      %1936 = vmatprep.subr.mxu0 0.0
      %1937 = vmatpush1.msra.mxu0 0.0
      %1938 = vmatprep.subr.mxu0 0.0
      %1939 = vmatpush1.msra.mxu0 0.0
      %1940 = vmatprep.subr.mxu0 0.0
      %1941 = vmatpush1.msra.mxu0 0.0
      %1942 = vmatprep.subr.mxu0 0.0
      %1943 = vmatpush1.msra.mxu0 0.0
      %1944 = vmatprep.subr.mxu0 0.0
      %1945 = vmatpush1.msra.mxu0 0.0
      %1946 = vmatprep.subr.mxu0 0.0
      %1947 = vmatpush1.msra.mxu0 0.0
      %1948 = vmatprep.subr.mxu0 0.0
      %1949 = vmatpush1.msra.mxu0 0.0
      %1950 = vmatprep.subr.mxu0 0.0
      %1951 = vmatpush1.msra.mxu0 0.0
      %1952 = vmatprep.subr.mxu0 0.0
      %1953 = vmatpush1.msra.mxu0 0.0
      %1954 = vmatprep.subr.mxu0 0.0
      %1955 = vmatpush1.msra.mxu0 0.0
      %1956 = vmatprep.subr.mxu0 0.0
      %1957 = vmatpush1.msra.mxu0 0.0
      %1958 = vmatprep.subr.mxu0 0.0
      %1959 = vmatpush1.msra.mxu0 0.0
      %1960 = vmatprep.subr.mxu0 0.0
      %1961 = vmatpush1.msra.mxu0 0.0
      %1962 = vmatprep.subr.mxu0 0.0
      %1963 = vmatpush1.msra.mxu0 0.0
      %1964 = vmatprep.subr.mxu0 0.0
      %1965 = vmatpush1.msra.mxu0 0.0
      %1966 = vmatprep.subr.mxu0 0.0
      %1967 = vmatpush1.msra.mxu0 0.0
      %1968 = vmatprep.subr.mxu0 0.0
      %1969 = vmatpush1.msra.mxu0 0.0
      %1970 = vmatprep.subr.mxu0 0.0
      %1971 = vmatpush1.msra.mxu0 0.0
      %1972 = vmatprep.subr.mxu0 0.0
      %1973 = vmatpush1.msra.mxu0 0.0
      %1974 = vmatprep.subr.mxu0 0.0
      %1975 = vmatpush1.msra.mxu0 0.0
      %1976 = vmatprep.subr.mxu0 0.0
      %1977 = vmatpush1.msra.mxu0 0.0
      %1978 = vmatprep.subr.mxu0 0.0
      %1979 = vmatpush1.msra.mxu0 0.0
      %1980 = vmatprep.subr.mxu0 0.0
      %1981 = vmatpush1.msra.mxu0 0.0
      %1982 = vmatprep.subr.mxu0 0.0
      %1983 = vmatpush1.msra.mxu0 0.0
      %1984 = vmatprep.subr.mxu0 0.0
      %1985 = vmatpush1.msra.mxu0 0.0
      %1986 = vmatprep.subr.mxu0 0.0
      %1987 = vmatpush1.msra.mxu0 0.0
      %1988 = vmatprep.subr.mxu0 0.0
      %1989 = vmatpush1.msra.mxu0 0.0
      %1990 = vmatprep.subr.mxu0 0.0
      %1991 = vmatpush1.msra.mxu0 0.0
      %1992 = vmatprep.mubr.f32.mxu0 0.0
      %1993 = vmatmul.mubr.f32.gmra.mrb[0].mxu0 %v1833
      %v1994 = vpop.f32.mrb[0].mxu0
      %v1995 = vadd.f32 %v1830, %v1994
      %v1996 = vpop.f32.mrb[0].mxu0
      %1997 = vmatprep.mubr.f32.mxu0 0.0
      %1998 = vmatmul.mubr.f32.gmra.mrb[0].mxu0 %v1836
      %v1999 = vpop.f32.mrb[0].mxu0
      %v2000 = vadd.f32 %v1830, %v1999
      %v2001 = vpop.f32.mrb[0].mxu0
      %2002 = vmatprep.mubr.f32.mxu0 0.0
      %2003 = vmatmul.mubr.f32.gmra.mrb[0].mxu0 %v1839
      %v2004 = vpop.f32.mrb[0].mxu0
      %v2005 = vadd.f32 %v1830, %v2004
      %v2006 = vpop.f32.mrb[0].mxu0
      %2007 = vmatprep.mubr.f32.mxu0 0.0
      %2008 = vmatmul.mubr.f32.gmra.mrb[0].mxu0 %v1842
      %v2009 = vpop.f32.mrb[0].mxu0
      %v2010 = vadd.f32 %v1830, %v2009
      %v2011 = vpop.f32.mrb[0].mxu0
      %2012 = vmatprep.mubr.f32.mxu0 0.0
      %2013 = vmatmul.mubr.f32.gmra.mrb[0].mxu0 %v1845
      %v2014 = vpop.f32.mrb[0].mxu0
      %v2015 = vadd.f32 %v1830, %v2014
      %v2016 = vpop.f32.mrb[0].mxu0
      %2017 = vmatprep.mubr.f32.mxu0 0.0
      %2018 = vmatmul.mubr.f32.gmra.mrb[0].mxu0 %v1848
      %v2019 = vpop.f32.mrb[0].mxu0
      %v2020 = vadd.f32 %v1830, %v2019
      %v2021 = vpop.f32.mrb[0].mxu0
      %2022 = vmatprep.mubr.f32.mxu0 0.0
      %2023 = vmatmul.mubr.f32.gmra.mrb[0].mxu0 %v1851
      %v2024 = vpop.f32.mrb[0].mxu0
      %v2025 = vadd.f32 %v1830, %v2024
      %v2026 = vpop.f32.mrb[0].mxu0
      %2027 = vmatprep.mubr.f32.mxu0 0.0
      %2028 = vmatmul.mubr.f32.gmra.mrb[0].mxu0 %v1854
      %v2029 = vpop.f32.mrb[0].mxu0
      %v2030 = vadd.f32 %v1830, %v2029
      %v2031 = vpop.f32.mrb[0].mxu0
      %2032 = vmatprep.mubr.f32.mxu0 0.0
      %2033 = vmatmul.mubr.f32.gmra.mrb[0].mxu0 %v1857
      %v2034 = vpop.f32.mrb[0].mxu0
      %v2035 = vadd.f32 %v1830, %v2034
      %v2036 = vpop.f32.mrb[0].mxu0
      %2037 = vmatprep.mubr.f32.mxu0 0.0
      %2038 = vmatmul.mubr.f32.gmra.mrb[0].mxu0 %v1860
      %v2039 = vpop.f32.mrb[0].mxu0
      %v2040 = vadd.f32 %v1830, %v2039
      %v2041 = vpop.f32.mrb[0].mxu0
      %2042 = vmatprep.mubr.f32.mxu0 0.0
      %2043 = vmatmul.mubr.f32.gmra.mrb[0].mxu0 %v1863
      %v2044 = vpop.f32.mrb[0].mxu0
      %v2045 = vadd.f32 %v1830, %v2044
      %v2046 = vpop.f32.mrb[0].mxu0
      %2047 = vmatprep.mubr.f32.mxu0 0.0
      %2048 = vmatmul.mubr.f32.gmra.mrb[0].mxu0 %v1866
      %v2049 = vpop.f32.mrb[0].mxu0
      %v2050 = vadd.f32 %v1830, %v2049
      %v2051 = vpop.f32.mrb[0].mxu0
      %2052 = vmatprep.mubr.f32.mxu0 0.0
      %2053 = vmatmul.mubr.f32.gmra.mrb[0].mxu0 %v1869
      %v2054 = vpop.f32.mrb[0].mxu0
      %v2055 = vadd.f32 %v1830, %v2054
      %v2056 = vpop.f32.mrb[0].mxu0
      %2057 = vmatprep.mubr.f32.mxu0 0.0
      %2058 = vmatmul.mubr.f32.gmra.mrb[0].mxu0 %v1872
      %v2059 = vpop.f32.mrb[0].mxu0
      %v2060 = vadd.f32 %v1830, %v2059
      %v2061 = vpop.f32.mrb[0].mxu0
      %2062 = vmatprep.mubr.f32.mxu0 0.0
      %2063 = vmatmul.mubr.f32.gmra.mrb[0].mxu0 %v1875
      %v2064 = vpop.f32.mrb[0].mxu0
      %v2065 = vadd.f32 %v1830, %v2064
      %v2066 = vpop.f32.mrb[0].mxu0
      %2067 = vmatprep.mubr.f32.mxu0 0.0
      %2068 = vmatmul.mubr.f32.gmra.mrb[0].mxu0 %v1878
      %v2069 = vpop.f32.mrb[0].mxu0
      %v2070 = vadd.f32 %v1830, %v2069
      %v2071 = vpop.f32.mrb[0].mxu0
      %2072 = vmatprep.mubr.f32.mxu0 0.0
      %2073 = vmatmul.mubr.f32.gmra.mrb[0].mxu0 %v1881
      %v2074 = vpop.f32.mrb[0].mxu0
      %v2075 = vadd.f32 %v1830, %v2074
      %v2076 = vpop.f32.mrb[0].mxu0
      %2077 = vmatprep.mubr.f32.mxu0 0.0
      %2078 = vmatmul.mubr.f32.gmra.mrb[0].mxu0 %v1884
      %v2079 = vpop.f32.mrb[0].mxu0
      %v2080 = vadd.f32 %v1830, %v2079
      %v2081 = vpop.f32.mrb[0].mxu0
      %2082 = vmatprep.mubr.f32.mxu0 0.0
      %2083 = vmatmul.mubr.f32.gmra.mrb[0].mxu0 %v1887
      %v2084 = vpop.f32.mrb[0].mxu0
      %v2085 = vadd.f32 %v1830, %v2084
      %v2086 = vpop.f32.mrb[0].mxu0
      %2087 = vmatprep.mubr.f32.mxu0 0.0
      %2088 = vmatmul.mubr.f32.gmra.mrb[0].mxu0 %v1890
      %v2089 = vpop.f32.mrb[0].mxu0
      %v2090 = vadd.f32 %v1830, %v2089
      %v2091 = vpop.f32.mrb[0].mxu0
      %2092 = vmatprep.mubr.f32.mxu0 0.0
      %2093 = vmatmul.mubr.f32.gmra.mrb[0].mxu0 %v1893
      %v2094 = vpop.f32.mrb[0].mxu0
      %v2095 = vadd.f32 %v1830, %v2094
      %v2096 = vpop.f32.mrb[0].mxu0
      %2097 = vmatprep.mubr.f32.mxu0 0.0
      %2098 = vmatmul.mubr.f32.gmra.mrb[0].mxu0 %v1896
      %v2099 = vpop.f32.mrb[0].mxu0
      %v2100 = vadd.f32 %v1830, %v2099
      %v2101 = vpop.f32.mrb[0].mxu0
      %2102 = vmatprep.mubr.f32.mxu0 0.0
      %2103 = vmatmul.mubr.f32.gmra.mrb[0].mxu0 %v1899
      %v2104 = vpop.f32.mrb[0].mxu0
      %v2105 = vadd.f32 %v1830, %v2104
      %v2106 = vpop.f32.mrb[0].mxu0
      %2107 = vmatprep.mubr.f32.mxu0 0.0
      %2108 = vmatmul.mubr.f32.gmra.mrb[0].mxu0 %v1902
      %v2109 = vpop.f32.mrb[0].mxu0
      %v2110 = vadd.f32 %v1830, %v2109
      %v2111 = vpop.f32.mrb[0].mxu0
      %2112 = vmatprep.mubr.f32.mxu0 0.0
      %2113 = vmatmul.mubr.f32.gmra.mrb[0].mxu0 %v1905
      %v2114 = vpop.f32.mrb[0].mxu0
      %v2115 = vadd.f32 %v1830, %v2114
      %v2116 = vpop.f32.mrb[0].mxu0
      %2117 = vmatprep.mubr.f32.mxu0 0.0
      %2118 = vmatmul.mubr.f32.gmra.mrb[0].mxu0 %v1908
      %v2119 = vpop.f32.mrb[0].mxu0
      %v2120 = vadd.f32 %v1830, %v2119
      %v2121 = vpop.f32.mrb[0].mxu0
      %2122 = vmatprep.mubr.f32.mxu0 0.0
      %2123 = vmatmul.mubr.f32.gmra.mrb[0].mxu0 %v1911
      %v2124 = vpop.f32.mrb[0].mxu0
      %v2125 = vadd.f32 %v1830, %v2124
      %v2126 = vpop.f32.mrb[0].mxu0
      %2127 = vmatprep.mubr.f32.mxu0 0.0
      %2128 = vmatmul.mubr.f32.gmra.mrb[0].mxu0 %v1914
      %v2129 = vpop.f32.mrb[0].mxu0
      %v2130 = vadd.f32 %v1830, %v2129
      %v2131 = vpop.f32.mrb[0].mxu0
      %2132 = vmatprep.mubr.f32.mxu0 0.0
      %2133 = vmatmul.mubr.f32.gmra.mrb[0].mxu0 %v1917
      %v2134 = vpop.f32.mrb[0].mxu0
      %v2135 = vadd.f32 %v1830, %v2134
      %v2136 = vpop.f32.mrb[0].mxu0
      %2137 = vmatprep.mubr.f32.mxu0 0.0
      %2138 = vmatmul.mubr.f32.gmra.mrb[0].mxu0 %v1920
      %v2139 = vpop.f32.mrb[0].mxu0
      %v2140 = vadd.f32 %v1830, %v2139
      %v2141 = vpop.f32.mrb[0].mxu0
      %2142 = vmatprep.mubr.f32.mxu0 0.0
      %2143 = vmatmul.mubr.f32.gmra.mrb[0].mxu0 %v1923
      %v2144 = vpop.f32.mrb[0].mxu0
      %v2145 = vadd.f32 %v1830, %v2144
      %v2146 = vpop.f32.mrb[0].mxu0
      %2147 = vmatprep.mubr.f32.mxu0 0.0
      %2148 = vmatmul.mubr.f32.gmra.mrb[0].mxu0 %v1926
      %v2149 = vpop.f32.mrb[0].mxu0
      %v2150 = vadd.f32 %v1830, %v2149
      %v2151 = vpop.f32.mrb[0].mxu0
      %2152 = vdwg.mxu0
      %vm2153 = vcmask 15360
      %2154 = vst.msk [vmem:[%s280] sm:$0xff] %vm2153, %v1995
      %2155 = vst.msk [vmem:[%s280 + $0x8] sm:$0xff] %vm2153, %v2000
      %2156 = vst.msk [vmem:[%s280 + $0x10] sm:$0xff] %vm2153, %v2005
      %2157 = vst.msk [vmem:[%s280 + $0x18] sm:$0xff] %vm2153, %v2010
      %2158 = vst.msk [vmem:[%s280 + $0x20] sm:$0xff] %vm2153, %v2015
      %2159 = vst.msk [vmem:[%s280 + $0x28] sm:$0xff] %vm2153, %v2020
      %2160 = vst.msk [vmem:[%s280 + $0x30] sm:$0xff] %vm2153, %v2025
      %2161 = vst.msk [vmem:[%s280 + $0x38] sm:$0xff] %vm2153, %v2030
      %2162 = vst.msk [vmem:[%s280 + $0x40] sm:$0xff] %vm2153, %v2035
      %2163 = vst.msk [vmem:[%s280 + $0x48] sm:$0xff] %vm2153, %v2040
      %2164 = vst.msk [vmem:[%s280 + $0x50] sm:$0xff] %vm2153, %v2045
      %2165 = vst.msk [vmem:[%s280 + $0x58] sm:$0xff] %vm2153, %v2050
      %2166 = vst.msk [vmem:[%s280 + $0x60] sm:$0xff] %vm2153, %v2055
      %2167 = vst.msk [vmem:[%s280 + $0x68] sm:$0xff] %vm2153, %v2060
      %2168 = vst.msk [vmem:[%s280 + $0x70] sm:$0xff] %vm2153, %v2065
      %2169 = vst.msk [vmem:[%s280 + $0x78] sm:$0xff] %vm2153, %v2070
      %2170 = vst.msk [vmem:[%s280 + $0x80] sm:$0xff] %vm2153, %v2075
      %2171 = vst.msk [vmem:[%s280 + $0x88] sm:$0xff] %vm2153, %v2080
      %2172 = vst.msk [vmem:[%s280 + $0x90] sm:$0xff] %vm2153, %v2085
      %2173 = vst.msk [vmem:[%s280 + $0x98] sm:$0xff] %vm2153, %v2090
      %2174 = vst.msk [vmem:[%s280 + $0xa0] sm:$0xff] %vm2153, %v2095
      %2175 = vst.msk [vmem:[%s280 + $0xa8] sm:$0xff] %vm2153, %v2100
      %2176 = vst.msk [vmem:[%s280 + $0xb0] sm:$0xff] %vm2153, %v2105
      %2177 = vst.msk [vmem:[%s280 + $0xb8] sm:$0xff] %vm2153, %v2110
      %2178 = vst.msk [vmem:[%s280 + $0xc0] sm:$0xff] %vm2153, %v2115
      %2179 = vst.msk [vmem:[%s280 + $0xc8] sm:$0xff] %vm2153, %v2120
      %2180 = vst.msk [vmem:[%s280 + $0xd0] sm:$0xff] %vm2153, %v2125
      %2181 = vst.msk [vmem:[%s280 + $0xd8] sm:$0xff] %vm2153, %v2130
      %2182 = vst.msk [vmem:[%s280 + $0xe0] sm:$0xff] %vm2153, %v2135
      %2183 = vst.msk [vmem:[%s280 + $0xe8] sm:$0xff] %vm2153, %v2140
      %2184 = vst.msk [vmem:[%s280 + $0xf0] sm:$0xff] %vm2153, %v2145
      %2185 = vst.msk [vmem:[%s280 + $0xf8] sm:$0xff] %vm2153, %v2150
      %s2186 = smul.u32 32, %s18
      %p2187 = scmp.lt.s32.totalorder %s2186, 127
      %s2188 = scalar_select %p2187, %s2186, 127
      %s2189 = smul.addr %s2188, 8
      %s2190 = scalar_lea.vmem %s7, %s2189
      // Predicated region
      $region49: #{decoder_deep_norm_pallas.1} parent=47 // pred_check
        %p2191 = pneg %p188
      $region50: #{decoder_deep_norm_pallas.1} parent=47 // pred_check_branch
        %2193 = sbr.rel (%p2191) target = $region52
      $region51: #{decoder_deep_norm_pallas.1} parent=47 // pred_region
        %s2194 = smul.u32 32, %s18
      $region52: #{decoder_deep_norm_pallas.1} parent=47 // pred_fallthru
        _
    $region48: #{decoder_deep_norm_pallas.1} parent=5 // pred_fallthru
      _
    %p2195 = scmp.le.s32.totalorder 2, %s13
    // Predicated region
    $region53: #{decoder_deep_norm_pallas.1} parent=5 // pred_check
      %p2196 = pneg %p2195
    $region54: #{decoder_deep_norm_pallas.1} parent=5 // pred_check_branch
      %2198 = sbr.rel (%p2196) target = $region56
    $region55: #{decoder_deep_norm_pallas.1} parent=5 // pred_region
      %s2199 = ssub.s32 %s13, 2
      // Predicated region
      $region57: #{decoder_deep_norm_pallas.1} parent=55 // pred_check
        %p2200 = pneg %p194
      $region58: #{decoder_deep_norm_pallas.1} parent=55 // pred_check_branch
        %2202 = sbr.rel (%p2200) target = $region60
      $region59: #{decoder_deep_norm_pallas.1} parent=55 // pred_region
        %s2203 = smul.u32 32, %s19
        %p2204 = scmp.lt.s32.totalorder %s2203, 127
        %s2205 = scalar_select %p2204, %s2203, 127
        %s2206 = smul.addr %s2205, 8
        %s2207 = scalar_lea.vmem %s7, %s2206
      $region60: #{decoder_deep_norm_pallas.1} parent=55 // pred_fallthru
        _
    $region56: #{decoder_deep_norm_pallas.1} parent=5 // pred_fallthru
      _
  $region6: #{decoder_deep_norm_pallas.1} parent=0 // loop_footer
    %s17 = sadd.s32 1, %s13
  $region7: #{decoder_deep_norm_pallas.1} parent=0 // loop_footer_branch
    %12 = sbr.rel target = $region3
  $region8: #{decoder_deep_norm_pallas.1} parent=0 // loop_exit
    _

</llo_original>
